<compile_context>
chip_gen: v7x
topology: tpu7x:2x2x1
jax: 0.10.0
libtpu: 0.0.40
codegen_flags: <defaults>
</compile_context>

<pallas_src>
import functools

import jax
import jax.numpy as jnp
from jax import lax
from jax.experimental import pallas as pl
from jax.experimental.pallas import tpu as pltpu


# ----------------------- packed-constant buffer layout -----------------------


def _round8(x):
    return -(-x // 8) * 8


def _const_layout(Cin, Ccat, Cmid, Cout):
    """Row offsets of every small weight inside the packed (rows, lanes) buffer.

    Used identically by the host-side packer and the kernel (static Python).
    """
    E, Co1 = Ccat + 1, Cout + 1          # xe carries a ones channel; block-1's
                                         # output carries an extra constant-1 row.
    shapes = [
        ("we1",  (Cmid + Co1, E)),       # [[w1_e^T | b1], [wsc_e^T | bsc], [0 | 1]]
        ("wx1",  (Cmid + Co1, Cin)),     # [[w1_x^T], [wsc_x^T], [0]]
        ("w2t1", (Co1, Cmid)),           # [w2^T ; 0]                  (block 1)
        ("b2f1", (Co1, 1)),              # [w2^T bdw + b2 ; 0]         (block 1)
        ("w12",  (Cmid, Co1)),           # [w1^T | b1]                 (block 2)
        ("w2t2", (Cout, Cmid)),          # w2^T                        (block 2)
        ("b2f2", (Cout, 1)),             # w2^T bdw + b2               (block 2)
    ]
    layout, off = {}, 0
    for name, (r, c) in shapes:
        layout[name] = (off, r, c)
        off += _round8(r)                # keep every group sublane-aligned
    lanes = max(128, ((max(c for _, (_, c) in shapes) + 127) // 128) * 128)
    return layout, off, lanes


def _pack_consts(p1, p2, Cin, Ccat, Cmid, Cout):
    """Stack all pointwise/shortcut weights + folded biases into one buffer."""
    layout, rows, lanes = _const_layout(Cin, Ccat, Cmid, Cout)
    w1, wsc = p1["w1"], p1["wsc"]
    z = lambda *s: jnp.zeros(s, jnp.float32)
    one = jnp.ones((1, 1), jnp.float32)

    we1 = jnp.concatenate([
        jnp.concatenate([w1[:Ccat].T, p1["b1"].T], axis=1),      # pwconv1 (skip part)
        jnp.concatenate([wsc[:Ccat].T, p1["bsc"].T], axis=1),    # shortcut (skip part)
        jnp.concatenate([z(1, Ccat), one], axis=1),              # constant-1 row
    ], axis=0)
    wx1 = jnp.concatenate([w1[Ccat:].T, wsc[Ccat:].T, z(1, Cin)], axis=0)
    w2t1 = jnp.concatenate([p1["w2"].T, z(1, Cmid)], axis=0)
    b2f1 = jnp.concatenate([p1["w2"].T @ p1["bdw"].T + p1["b2"].T, z(1, 1)], axis=0)
    w12 = jnp.concatenate([p2["w1"].T, p2["b1"].T], axis=1)
    w2t2 = p2["w2"].T
    b2f2 = p2["w2"].T @ p2["bdw"].T + p2["b2"].T

    buf = jnp.zeros((rows, lanes), jnp.float32)
    for name, t in dict(we1=we1, wx1=wx1, w2t1=w2t1, b2f1=b2f1,
                        w12=w12, w2t2=w2t2, b2f2=b2f2).items():
        off, r, c = layout[name]
        assert t.shape == (r, c) and c <= lanes, (name, t.shape, (r, c))
        buf = lax.dynamic_update_slice(buf, t.astype(jnp.float32), (off, 0))
    return buf


# ----------------------------- fused Pallas kernel -----------------------------


def _fused_stage_kernel(x_ref, xe_ref, u_ref, wm_ref, c_ref, o_ref, *,
                        Cin, Ccat, Cmid, Cout, K, Wout):
    """Upsample + concat + 2x DWInvertedBlock for one batch sample.

    Layout: channels on sublanes, flattened spatial (Hout*Wout) on lanes.
    """
    HW = xe_ref.shape[2]                    # Hout*Wout (lane dim, multiple of 128)
    p = K // 2
    center = p * K + p
    inv_hw = 1.0 / HW
    cdt = x_ref.dtype                       # compute dtype (f32 or bf16)
    layout, _, _ = _const_layout(Cin, Ccat, Cmid, Cout)

    def cs(name):                           # static slice of the packed consts
        off, r, c = layout[name]
        return c_ref[off:off + r, 0:c]

    def mid_path(h, blk, w2t, b2f):
        # InstanceNorm (per channel over spatial), one-pass in f32, no affine.
        mean = jnp.sum(h, axis=1, keepdims=True) * inv_hw
        ex2 = jnp.sum(h * h, axis=1, keepdims=True) * inv_hw
        var = jnp.maximum(ex2 - mean * mean, 0.0)         # guard fp cancellation
        h = (h - mean) * lax.rsqrt(var + 1e-5)
        h = jnp.maximum(h, 0.0).astype(cdt)               # ReLU
        # Depthwise KxK 'same' conv (stride 1): each tap is an XLU lane roll of
        # the flattened spatial axis times its pre-fused (weight ⊗ 0/1 padding
        # mask) tensor.  Accumulator starts from the center tap (no zero-fill).
        acc = h * wm_ref[blk * K * K + center]
        for kh in range(K):
            for kw in range(K):
                idx = kh * K + kw
                if idx == center:
                    continue
                d = (kh - p) * Wout + (kw - p)            # flattened spatial offset
                shifted = pltpu.roll(h, shift=(-d) % HW, axis=1)
                acc = acc + shifted * wm_ref[blk * K * K + idx]
        # pwconv2; conv_dw bias already folded on host: b2f = w2^T bdw + b2.
        return jnp.dot(w2t, acc, preferred_element_type=jnp.float32) + b2f

    xe = xe_ref[0]                          # (Ccat+1, HW) — ones channel last
    x = x_ref[0]                            # (Cin, Hin*Win)

    # Bilinear (align_corners=True) upsample as one lane-dense matmul with the
    # precomputed kron(Uh, Uw)^T operator: (Cin, Hin*Win) @ (Hin*Win, HW).
    x0 = jnp.dot(x, u_ref[...], preferred_element_type=jnp.float32)

    # --- block 1: pwconv1 + shortcut 1x1 conv (+ biases) as 2 stacked matmuls;
    #     the torch.cat([x_e, x_0], dim=1) is folded into the split weights.
    hm = (jnp.dot(cs("we1"), xe, preferred_element_type=jnp.float32)
          + jnp.dot(cs("wx1"), x0.astype(cdt), preferred_element_type=jnp.float32))
    h1, sc1 = hm[:Cmid], hm[Cmid:]          # (Cmid, HW), (Cout+1, HW)
    y1e = mid_path(h1, 0, cs("w2t1"), cs("b2f1")) + sc1   # last row == 1.0 exactly

    # --- block 2 (identity shortcut); its pwconv1 bias rides on y1e's 1-row.
    h2 = jnp.dot(cs("w12"), y1e.astype(cdt), preferred_element_type=jnp.float32)
    y2 = mid_path(h2, 1, cs("w2t2"), cs("b2f2")) + y1e[:Cout]

    o_ref[0] = y2.astype(o_ref.dtype)       # (Cout, HW) lane-dense store


# ----------------------------- glue (plain JAX) -----------------------------


def bilinear_matrix(n_in, n_out):
    # 1-D linear interpolation matrix, align_corners=True (PyTorch Upsample).
    if n_in == 1:
        return jnp.ones((n_out, 1), jnp.float32)     # replicate the single sample
    if n_out == 1:
        # PyTorch align_corners=True with output size 1 uses scale 0 -> index 0.
        return jnp.eye(1, n_in, dtype=jnp.float32)
    i = jnp.arange(n_out, dtype=jnp.float32)
    src = i * (n_in - 1) / (n_out - 1)
    i0 = jnp.clip(jnp.floor(src).astype(jnp.int32), 0, n_in - 1)
    i1 = jnp.clip(i0 + 1, 0, n_in - 1)
    frac = src - i0.astype(jnp.float32)
    cols = jnp.arange(n_in)[None, :]
    m = jnp.where(cols == i0[:, None], (1.0 - frac)[:, None], 0.0)
    m = m + jnp.where(cols == i1[:, None], frac[:, None], 0.0)
    return m.astype(jnp.float32)


def _dw_tap_masks(H, W, K):
    # (K*K, H*W) 0/1 masks implementing zero 'same'-padding for each tap.
    p = K // 2
    r = jnp.arange(H)[:, None]
    c = jnp.arange(W)[None, :]
    rows = []
    for kh in range(K):
        for kw in range(K):
            dh, dw = kh - p, kw - p
            m = ((r + dh >= 0) & (r + dh < H) & (c + dw >= 0) & (c + dw < W))
            rows.append(m.reshape(-1))
    return jnp.stack(rows).astype(jnp.float32)


def dw_inverted_up_stage(x_nchw, xe_nchw, p1, p2, upsample_factor=2, K=3,
                         compute_dtype=jnp.float32):
    """Forward of DWInvertedUpStage (2D).  NCHW in/out; one fused Pallas call.

    compute_dtype=jnp.bfloat16 is the recommended deployment setting on
    v6e/v7x (bf16 MXU + bf16 VPU, f32 accumulation & norm statistics);
    keep float32 on v5e.
    """
    N, Cin, H, W = x_nchw.shape
    _, Ccat, Hout, Wout = xe_nchw.shape
    assert Hout == H * upsample_factor and Wout == W * upsample_factor
    HWin, HW = H * W, Hout * Wout
    Cmid, Cout = p1["w2"].shape
    cdt = compute_dtype

    # Free reshapes: channels on sublanes, flattened spatial on lanes.
    x = x_nchw.reshape(N, Cin, HWin).astype(cdt)
    # Ones channel appended to the skip input so block-1's pwconv1/shortcut
    # biases are folded into the stacked matmul (ride the MXU for free).
    xe = jnp.concatenate(
        [xe_nchw.reshape(N, Ccat, HW), jnp.ones((N, 1, HW), xe_nchw.dtype)],
        axis=1).astype(cdt)

    # Bilinear align_corners=True upsample operator, applied as x @ U^T.
    # TODO(synk): switch to a separable (H then W) two-pass operator before
    # scaling resolution; the dense kron is O((H*W)^2) and would not fit
    # v7x's 64 MiB VMEM at large inputs (fine at this toy size: 64 KiB).
    ut = jnp.kron(bilinear_matrix(H, Hout), bilinear_matrix(W, Wout)).T.astype(cdt)

    # Pre-fused depthwise tap tensors: wm[blk*K*K + k] = wdw[:, k] ⊗ mask_k.
    masks = _dw_tap_masks(Hout, Wout, K)                         # (K*K, HW)
    wm = jnp.concatenate(
        [p1["wdw"][:, :, None] * masks[:, None, :],
         p2["wdw"][:, :, None] * masks[:, None, :]], axis=0).astype(cdt)

    consts = _pack_consts(p1, p2, Cin, Ccat, Cmid, Cout).astype(cdt)

    # Grid-invariant operands (ut / wm / consts) use constant index_maps, so
    # their tiles are only fetched once; total constant VMEM is < 1 MiB here,
    # well inside even v7x's 64 MiB budget.
    grid_spec = pltpu.PrefetchScalarGridSpec(
        num_scalar_prefetch=0,
        grid=(N,),
        in_specs=[
            pl.BlockSpec((1, Cin, HWin), lambda n: (n, 0, 0)),
            pl.BlockSpec((1, Ccat + 1, HW), lambda n: (n, 0, 0)),
            pl.BlockSpec(ut.shape, lambda n: (0, 0)),
            pl.BlockSpec(wm.shape, lambda n: (0, 0, 0)),
            pl.BlockSpec(consts.shape, lambda n: (0, 0)),
        ],
        out_specs=pl.BlockSpec((1, Cout, HW), lambda n: (n, 0, 0)),
    )
    out = pl.pallas_call(
        functools.partial(_fused_stage_kernel, Cin=Cin, Ccat=Ccat, Cmid=Cmid,
                          Cout=Cout, K=K, Wout=Wout),
        out_shape=jax.ShapeDtypeStruct((N, Cout, HW), jnp.float32),
        grid_spec=grid_spec,
        # batch splits across the two TensorCores on v7x; harmless elsewhere.
        compiler_params=pltpu.CompilerParams(dimension_semantics=("parallel",)),
    )(x, xe, ut, wm, consts)
    return out.reshape(N, Cout, Hout, Wout)


# ----------------------------- pure-JAX reference -----------------------------


def _block_ref(x, w1, b1, wdw, bdw, w2, b2, wsc=None, bsc=None, K=3):
    N, H, W, Cin = x.shape
    h = jnp.einsum("nhwc,cd->nhwd", x, w1) + b1[0]
    mean = jnp.mean(h, axis=(1, 2), keepdims=True)
    var = jnp.var(h, axis=(1, 2), keepdims=True)
    h = (h - mean) / jnp.sqrt(var + 1e-5)
    h = jnp.maximum(h, 0.0)
    p = K // 2
    hp = jnp.pad(h, ((0, 0), (p, p), (p, p), (0, 0)))
    acc = jnp.zeros_like(h)
    for kh in range(K):
        for kw in range(K):
            acc = acc + hp[:, kh:kh + H, kw:kw + W, :] * wdw[kh * K + kw]
    acc = acc + bdw[0]
    out = jnp.einsum("nhwc,cd->nhwd", acc, w2) + b2[0]
    sc = x if wsc is None else jnp.einsum("nhwc,cd->nhwd", x, wsc) + bsc[0]
    return out + sc


def reference(x_nchw, xe_nchw, p1, p2, s, K):
    N, Cin, H, W = x_nchw.shape
    x = jnp.transpose(x_nchw, (0, 2, 3, 1))
    xe = jnp.transpose(xe_nchw, (0, 2, 3, 1))
    uh = bilinear_matrix(H, H * s)
    uw = bilinear_matrix(W, W * s)
    x0 = jnp.einsum("oh,pw,nhwc->nopc", uh, uw, x)
    xc = jnp.concatenate([xe, x0], axis=-1)
    y = _block_ref(xc, **p1, K=K)
    y = _block_ref(y, **p2, K=K)
    return jnp.transpose(y, (0, 3, 1, 2))


# ----------------------------- main -----------------------------


if __name__ == "__main__":
    key = jax.random.PRNGKey(0)
    keys = jax.random.split(key, 20)

    N, Cin, H, W = 2, 8, 8, 8        # x before upsampling
    Ccat = 4                         # skip-connection channels
    Cout = 8                         # out_channels
    s = 2                            # upsample_factors (Hout=Wout=16 -> 256 lanes)
    K = 3                            # kernel_size
    mlp_ratio = 4
    Cmid = int(mlp_ratio * Cout)
    C1_in = Cin + Ccat               # block-1 input channels after concat

    x = jax.random.normal(keys[0], (N, Cin, H, W), jnp.float32)
    x_e = jax.random.normal(keys[1], (N, Ccat, H * s, W * s), jnp.float32)

    def init(k, shape, scale=0.1):
        return scale * jax.random.normal(k, shape, jnp.float32)

    # Block 1 (in=C1_in != out=Cout -> has shortcut 1x1 conv)
    p1 = dict(
        w1=init(keys[2], (C1_in, Cmid)), b1=init(keys[3], (1, Cmid)),
        wdw=init(keys[4], (K * K, Cmid)), bdw=init(keys[5], (1, Cmid)),
        w2=init(keys[6], (Cmid, Cout)), b2=init(keys[7], (1, Cout)),
        wsc=init(keys[8], (C1_in, Cout)), bsc=init(keys[9], (1, Cout)),
    )
    # Block 2 (in == out -> identity shortcut)
    p2 = dict(
        w1=init(keys[10], (Cout, Cmid)), b1=init(keys[11], (1, Cmid)),
        wdw=init(keys[12], (K * K, Cmid)), bdw=init(keys[13], (1, Cmid)),
        w2=init(keys[14], (Cmid, Cout)), b2=init(keys[15], (1, Cout)),
    )

    # f32 compute path (v5e default; also the strict-correctness configuration).
    # compute_dtype=jnp.bfloat16 is the recommended setting on v6e/v7x.
    fwd = jax.jit(functools.partial(dw_inverted_up_stage, upsample_factor=s, K=K))
    y = jax.block_until_ready(fwd(x, x_e, p1, p2))

    y_ref = reference(x, x_e, p1, p2, s, K)
    assert y.shape == (N, Cout, H * s, W * s), y.shape
    err = float(jnp.max(jnp.abs(y - y_ref)))
    assert jnp.allclose(y, y_ref, atol=1e-4, rtol=1e-4), err

    print("KERNEL_OK")
</pallas_src>

<mosaic_0001>
module attributes {stable_mosaic.version = 11 : i64} {
  func.func @_fused_stage_kernel(%arg0: i32, %arg1: memref<1x8x64xf32, #tpu.memory_space<vmem>>, %arg2: memref<1x5x256xf32, #tpu.memory_space<vmem>>, %arg3: memref<64x256xf32, #tpu.memory_space<vmem>>, %arg4: memref<18x32x256xf32, #tpu.memory_space<vmem>>, %arg5: memref<176x128xf32, #tpu.memory_space<vmem>>, %arg6: memref<1x8x256xf32, #tpu.memory_space<vmem>>) attributes {dimension_semantics = [#tpu.dimension_semantics<parallel>], iteration_bounds = array<i64: 2>, scalar_prefetch = 0 : i64, scratch_operands = 0 : i64, tpu.core_type = #tpu.core_type<tc>, window_params = [{transform_indices = @transform_0, window_bounds = array<i64: 1, 8, 64>}, {transform_indices = @transform_1, window_bounds = array<i64: 1, 5, 256>}, {pipeline_mode = #tpu.pipeline_mode<synchronous>, transform_indices = @transform_2, window_bounds = array<i64: 64, 256>}, {pipeline_mode = #tpu.pipeline_mode<synchronous>, transform_indices = @transform_3, window_bounds = array<i64: 18, 32, 256>}, {pipeline_mode = #tpu.pipeline_mode<synchronous>, transform_indices = @transform_4, window_bounds = array<i64: 176, 128>}, {transform_indices = @transform_5, window_bounds = array<i64: 1, 8, 256>}]} {
    %c0 = arith.constant 0 : index
    %c0_0 = arith.constant 0 : index
    %c0_1 = arith.constant 0 : index
    %0 = vector.load %arg2[%c0, %c0_0, %c0_1] : memref<1x5x256xf32, #tpu.memory_space<vmem>>, vector<1x5x256xf32>
    %1 = vector.shape_cast %0 : vector<1x5x256xf32> to vector<5x256xf32>
    %c0_2 = arith.constant 0 : index
    %c0_3 = arith.constant 0 : index
    %c0_4 = arith.constant 0 : index
    %2 = vector.load %arg1[%c0_2, %c0_3, %c0_4] : memref<1x8x64xf32, #tpu.memory_space<vmem>>, vector<1x8x64xf32>
    %3 = vector.shape_cast %2 : vector<1x8x64xf32> to vector<8x64xf32>
    %c0_5 = arith.constant 0 : index
    %c0_6 = arith.constant 0 : index
    %4 = vector.load %arg3[%c0_5, %c0_6] : memref<64x256xf32, #tpu.memory_space<vmem>>, vector<64x256xf32>
    %cst = arith.constant dense<0.000000e+00> : vector<8x256xf32>
    %5 = tpu.matmul %3, %4, %cst {dimension_numbers = #tpu.dot_dimension_numbers<[1], [0], [0], [1], [0, 0, 1, 1], [], []>} : vector<8x64xf32>, vector<64x256xf32>, vector<8x256xf32> -> vector<8x256xf32>
    %c0_7 = arith.constant 0 : index
    %c0_8 = arith.constant 0 : index
    %6 = vector.load %arg5[%c0_7, %c0_8] : memref<176x128xf32, #tpu.memory_space<vmem>>, vector<41x5xf32>
    %cst_9 = arith.constant dense<0.000000e+00> : vector<41x256xf32>
    %7 = tpu.matmul %6, %1, %cst_9 {dimension_numbers = #tpu.dot_dimension_numbers<[1], [0], [0], [1], [0, 0, 1, 1], [], []>} : vector<41x5xf32>, vector<5x256xf32>, vector<41x256xf32> -> vector<41x256xf32>
    %c48 = arith.constant 48 : index
    %c0_10 = arith.constant 0 : index
    %8 = vector.load %arg5[%c48, %c0_10] : memref<176x128xf32, #tpu.memory_space<vmem>>, vector<41x8xf32>
    %cst_11 = arith.constant dense<0.000000e+00> : vector<41x256xf32>
    %9 = tpu.matmul %8, %5, %cst_11 {dimension_numbers = #tpu.dot_dimension_numbers<[1], [0], [0], [1], [0, 0, 1, 1], [], []>} : vector<41x8xf32>, vector<8x256xf32>, vector<41x256xf32> -> vector<41x256xf32>
    %10 = arith.addf %7, %9 : vector<41x256xf32>
    %11 = vector.extract_strided_slice %10 {offsets = [0, 0], sizes = [32, 256], strides = [1, 1]} : vector<41x256xf32> to vector<32x256xf32>
    %12 = vector.extract_strided_slice %10 {offsets = [32, 0], sizes = [9, 256], strides = [1, 1]} : vector<41x256xf32> to vector<9x256xf32>
    %c96 = arith.constant 96 : index
    %c0_12 = arith.constant 0 : index
    %13 = vector.load %arg5[%c96, %c0_12] : memref<176x128xf32, #tpu.memory_space<vmem>>, vector<9x32xf32>
    %c112 = arith.constant 112 : index
    %c0_13 = arith.constant 0 : index
    %14 = vector.load %arg5[%c112, %c0_13] : memref<176x128xf32, #tpu.memory_space<vmem>>, vector<9x1xf32>
    %cst_14 = arith.constant dense<0.000000e+00> : vector<32xf32>
    %15 = vector.multi_reduction <add>, %11, %cst_14 [1] : vector<32x256xf32> to vector<32xf32>
    %16 = vector.shape_cast %15 : vector<32xf32> to vector<32x1xf32>
    %cst_15 = arith.constant 3.906250e-03 : f32
    %17 = vector.broadcast %cst_15 : f32 to vector<32x1xf32>
    %18 = arith.mulf %16, %17 : vector<32x1xf32>
    %19 = arith.mulf %11, %11 : vector<32x256xf32>
    %cst_16 = arith.constant dense<0.000000e+00> : vector<32xf32>
    %20 = vector.multi_reduction <add>, %19, %cst_16 [1] : vector<32x256xf32> to vector<32xf32>
    %21 = vector.shape_cast %20 : vector<32xf32> to vector<32x1xf32>
    %cst_17 = arith.constant 3.906250e-03 : f32
    %22 = vector.broadcast %cst_17 : f32 to vector<32x1xf32>
    %23 = arith.mulf %21, %22 : vector<32x1xf32>
    %24 = arith.mulf %18, %18 : vector<32x1xf32>
    %25 = arith.subf %23, %24 : vector<32x1xf32>
    %cst_18 = arith.constant 0.000000e+00 : f32
    %26 = vector.broadcast %cst_18 : f32 to vector<32x1xf32>
    %27 = arith.maximumf %25, %26 : vector<32x1xf32>
    %28 = vector.broadcast %18 : vector<32x1xf32> to vector<32x256xf32>
    %29 = arith.subf %11, %28 : vector<32x256xf32>
    %cst_19 = arith.constant 9.99999974E-6 : f32
    %30 = vector.broadcast %cst_19 : f32 to vector<32x1xf32>
    %31 = arith.addf %27, %30 : vector<32x1xf32>
    %32 = math.rsqrt %31 : vector<32x1xf32>
    %33 = vector.broadcast %32 : vector<32x1xf32> to vector<32x256xf32>
    %34 = arith.mulf %29, %33 : vector<32x256xf32>
    %cst_20 = arith.constant 0.000000e+00 : f32
    %35 = vector.broadcast %cst_20 : f32 to vector<32x256xf32>
    %36 = arith.maximumf %34, %35 : vector<32x256xf32>
    %c4 = arith.constant 4 : index
    %c0_21 = arith.constant 0 : index
    %c0_22 = arith.constant 0 : index
    %37 = vector.load %arg4[%c4, %c0_21, %c0_22] : memref<18x32x256xf32, #tpu.memory_space<vmem>>, vector<1x32x256xf32>
    %38 = vector.shape_cast %37 : vector<1x32x256xf32> to vector<32x256xf32>
    %39 = arith.mulf %36, %38 : vector<32x256xf32>
    %c17_i32 = arith.constant 17 : i32
    %40 = tpu.dynamic_rotate %36 by %c17_i32 dim 1 : vector<32x256xf32>, i32 -> vector<32x256xf32>
    %c0_23 = arith.constant 0 : index
    %c0_24 = arith.constant 0 : index
    %c0_25 = arith.constant 0 : index
    %41 = vector.load %arg4[%c0_23, %c0_24, %c0_25] : memref<18x32x256xf32, #tpu.memory_space<vmem>>, vector<1x32x256xf32>
    %42 = vector.shape_cast %41 : vector<1x32x256xf32> to vector<32x256xf32>
    %43 = arith.mulf %40, %42 : vector<32x256xf32>
    %44 = arith.addf %39, %43 : vector<32x256xf32>
    %c16_i32 = arith.constant 16 : i32
    %45 = tpu.dynamic_rotate %36 by %c16_i32 dim 1 : vector<32x256xf32>, i32 -> vector<32x256xf32>
    %c1 = arith.constant 1 : index
    %c0_26 = arith.constant 0 : index
    %c0_27 = arith.constant 0 : index
    %46 = vector.load %arg4[%c1, %c0_26, %c0_27] : memref<18x32x256xf32, #tpu.memory_space<vmem>>, vector<1x32x256xf32>
    %47 = vector.shape_cast %46 : vector<1x32x256xf32> to vector<32x256xf32>
    %48 = arith.mulf %45, %47 : vector<32x256xf32>
    %49 = arith.addf %44, %48 : vector<32x256xf32>
    %c15_i32 = arith.constant 15 : i32
    %50 = tpu.dynamic_rotate %36 by %c15_i32 dim 1 : vector<32x256xf32>, i32 -> vector<32x256xf32>
    %c2 = arith.constant 2 : index
    %c0_28 = arith.constant 0 : index
    %c0_29 = arith.constant 0 : index
    %51 = vector.load %arg4[%c2, %c0_28, %c0_29] : memref<18x32x256xf32, #tpu.memory_space<vmem>>, vector<1x32x256xf32>
    %52 = vector.shape_cast %51 : vector<1x32x256xf32> to vector<32x256xf32>
    %53 = arith.mulf %50, %52 : vector<32x256xf32>
    %54 = arith.addf %49, %53 : vector<32x256xf32>
    %c1_i32 = arith.constant 1 : i32
    %55 = tpu.dynamic_rotate %36 by %c1_i32 dim 1 : vector<32x256xf32>, i32 -> vector<32x256xf32>
    %c3 = arith.constant 3 : index
    %c0_30 = arith.constant 0 : index
    %c0_31 = arith.constant 0 : index
    %56 = vector.load %arg4[%c3, %c0_30, %c0_31] : memref<18x32x256xf32, #tpu.memory_space<vmem>>, vector<1x32x256xf32>
    %57 = vector.shape_cast %56 : vector<1x32x256xf32> to vector<32x256xf32>
    %58 = arith.mulf %55, %57 : vector<32x256xf32>
    %59 = arith.addf %54, %58 : vector<32x256xf32>
    %c255_i32 = arith.constant 255 : i32
    %60 = tpu.dynamic_rotate %36 by %c255_i32 dim 1 : vector<32x256xf32>, i32 -> vector<32x256xf32>
    %c5 = arith.constant 5 : index
    %c0_32 = arith.constant 0 : index
    %c0_33 = arith.constant 0 : index
    %61 = vector.load %arg4[%c5, %c0_32, %c0_33] : memref<18x32x256xf32, #tpu.memory_space<vmem>>, vector<1x32x256xf32>
    %62 = vector.shape_cast %61 : vector<1x32x256xf32> to vector<32x256xf32>
    %63 = arith.mulf %60, %62 : vector<32x256xf32>
    %64 = arith.addf %59, %63 : vector<32x256xf32>
    %c241_i32 = arith.constant 241 : i32
    %65 = tpu.dynamic_rotate %36 by %c241_i32 dim 1 : vector<32x256xf32>, i32 -> vector<32x256xf32>
    %c6 = arith.constant 6 : index
    %c0_34 = arith.constant 0 : index
    %c0_35 = arith.constant 0 : index
    %66 = vector.load %arg4[%c6, %c0_34, %c0_35] : memref<18x32x256xf32, #tpu.memory_space<vmem>>, vector<1x32x256xf32>
    %67 = vector.shape_cast %66 : vector<1x32x256xf32> to vector<32x256xf32>
    %68 = arith.mulf %65, %67 : vector<32x256xf32>
    %69 = arith.addf %64, %68 : vector<32x256xf32>
    %c240_i32 = arith.constant 240 : i32
    %70 = tpu.dynamic_rotate %36 by %c240_i32 dim 1 : vector<32x256xf32>, i32 -> vector<32x256xf32>
    %c7 = arith.constant 7 : index
    %c0_36 = arith.constant 0 : index
    %c0_37 = arith.constant 0 : index
    %71 = vector.load %arg4[%c7, %c0_36, %c0_37] : memref<18x32x256xf32, #tpu.memory_space<vmem>>, vector<1x32x256xf32>
    %72 = vector.shape_cast %71 : vector<1x32x256xf32> to vector<32x256xf32>
    %73 = arith.mulf %70, %72 : vector<32x256xf32>
    %74 = arith.addf %69, %73 : vector<32x256xf32>
    %c239_i32 = arith.constant 239 : i32
    %75 = tpu.dynamic_rotate %36 by %c239_i32 dim 1 : vector<32x256xf32>, i32 -> vector<32x256xf32>
    %c8 = arith.constant 8 : index
    %c0_38 = arith.constant 0 : index
    %c0_39 = arith.constant 0 : index
    %76 = vector.load %arg4[%c8, %c0_38, %c0_39] : memref<18x32x256xf32, #tpu.memory_space<vmem>>, vector<1x32x256xf32>
    %77 = vector.shape_cast %76 : vector<1x32x256xf32> to vector<32x256xf32>
    %78 = arith.mulf %75, %77 : vector<32x256xf32>
    %79 = arith.addf %74, %78 : vector<32x256xf32>
    %cst_40 = arith.constant dense<0.000000e+00> : vector<9x256xf32>
    %80 = tpu.matmul %13, %79, %cst_40 {dimension_numbers = #tpu.dot_dimension_numbers<[1], [0], [0], [1], [0, 0, 1, 1], [], []>} : vector<9x32xf32>, vector<32x256xf32>, vector<9x256xf32> -> vector<9x256xf32>
    %81 = vector.broadcast %14 : vector<9x1xf32> to vector<9x256xf32>
    %82 = arith.addf %80, %81 : vector<9x256xf32>
    %83 = arith.addf %82, %12 : vector<9x256xf32>
    %c128 = arith.constant 128 : index
    %c0_41 = arith.constant 0 : index
    %84 = vector.load %arg5[%c128, %c0_41] : memref<176x128xf32, #tpu.memory_space<vmem>>, vector<32x9xf32>
    %cst_42 = arith.constant dense<0.000000e+00> : vector<32x256xf32>
    %85 = tpu.matmul %84, %83, %cst_42 {dimension_numbers = #tpu.dot_dimension_numbers<[1], [0], [0], [1], [0, 0, 1, 1], [], []>} : vector<32x9xf32>, vector<9x256xf32>, vector<32x256xf32> -> vector<32x256xf32>
    %c160 = arith.constant 160 : index
    %c0_43 = arith.constant 0 : index
    %86 = vector.load %arg5[%c160, %c0_43] : memref<176x128xf32, #tpu.memory_space<vmem>>, vector<8x32xf32>
    %c168 = arith.constant 168 : index
    %c0_44 = arith.constant 0 : index
    %87 = vector.load %arg5[%c168, %c0_44] : memref<176x128xf32, #tpu.memory_space<vmem>>, vector<8x1xf32>
    %cst_45 = arith.constant dense<0.000000e+00> : vector<32xf32>
    %88 = vector.multi_reduction <add>, %85, %cst_45 [1] : vector<32x256xf32> to vector<32xf32>
    %89 = vector.shape_cast %88 : vector<32xf32> to vector<32x1xf32>
    %cst_46 = arith.constant 3.906250e-03 : f32
    %90 = vector.broadcast %cst_46 : f32 to vector<32x1xf32>
    %91 = arith.mulf %89, %90 : vector<32x1xf32>
    %92 = arith.mulf %85, %85 : vector<32x256xf32>
    %cst_47 = arith.constant dense<0.000000e+00> : vector<32xf32>
    %93 = vector.multi_reduction <add>, %92, %cst_47 [1] : vector<32x256xf32> to vector<32xf32>
    %94 = vector.shape_cast %93 : vector<32xf32> to vector<32x1xf32>
    %cst_48 = arith.constant 3.906250e-03 : f32
    %95 = vector.broadcast %cst_48 : f32 to vector<32x1xf32>
    %96 = arith.mulf %94, %95 : vector<32x1xf32>
    %97 = arith.mulf %91, %91 : vector<32x1xf32>
    %98 = arith.subf %96, %97 : vector<32x1xf32>
    %cst_49 = arith.constant 0.000000e+00 : f32
    %99 = vector.broadcast %cst_49 : f32 to vector<32x1xf32>
    %100 = arith.maximumf %98, %99 : vector<32x1xf32>
    %101 = vector.broadcast %91 : vector<32x1xf32> to vector<32x256xf32>
    %102 = arith.subf %85, %101 : vector<32x256xf32>
    %cst_50 = arith.constant 9.99999974E-6 : f32
    %103 = vector.broadcast %cst_50 : f32 to vector<32x1xf32>
    %104 = arith.addf %100, %103 : vector<32x1xf32>
    %105 = math.rsqrt %104 : vector<32x1xf32>
    %106 = vector.broadcast %105 : vector<32x1xf32> to vector<32x256xf32>
    %107 = arith.mulf %102, %106 : vector<32x256xf32>
    %cst_51 = arith.constant 0.000000e+00 : f32
    %108 = vector.broadcast %cst_51 : f32 to vector<32x256xf32>
    %109 = arith.maximumf %107, %108 : vector<32x256xf32>
    %c13 = arith.constant 13 : index
    %c0_52 = arith.constant 0 : index
    %c0_53 = arith.constant 0 : index
    %110 = vector.load %arg4[%c13, %c0_52, %c0_53] : memref<18x32x256xf32, #tpu.memory_space<vmem>>, vector<1x32x256xf32>
    %111 = vector.shape_cast %110 : vector<1x32x256xf32> to vector<32x256xf32>
    %112 = arith.mulf %109, %111 : vector<32x256xf32>
    %c17_i32_54 = arith.constant 17 : i32
    %113 = tpu.dynamic_rotate %109 by %c17_i32_54 dim 1 : vector<32x256xf32>, i32 -> vector<32x256xf32>
    %c9 = arith.constant 9 : index
    %c0_55 = arith.constant 0 : index
    %c0_56 = arith.constant 0 : index
    %114 = vector.load %arg4[%c9, %c0_55, %c0_56] : memref<18x32x256xf32, #tpu.memory_space<vmem>>, vector<1x32x256xf32>
    %115 = vector.shape_cast %114 : vector<1x32x256xf32> to vector<32x256xf32>
    %116 = arith.mulf %113, %115 : vector<32x256xf32>
    %117 = arith.addf %112, %116 : vector<32x256xf32>
    %c16_i32_57 = arith.constant 16 : i32
    %118 = tpu.dynamic_rotate %109 by %c16_i32_57 dim 1 : vector<32x256xf32>, i32 -> vector<32x256xf32>
    %c10 = arith.constant 10 : index
    %c0_58 = arith.constant 0 : index
    %c0_59 = arith.constant 0 : index
    %119 = vector.load %arg4[%c10, %c0_58, %c0_59] : memref<18x32x256xf32, #tpu.memory_space<vmem>>, vector<1x32x256xf32>
    %120 = vector.shape_cast %119 : vector<1x32x256xf32> to vector<32x256xf32>
    %121 = arith.mulf %118, %120 : vector<32x256xf32>
    %122 = arith.addf %117, %121 : vector<32x256xf32>
    %c15_i32_60 = arith.constant 15 : i32
    %123 = tpu.dynamic_rotate %109 by %c15_i32_60 dim 1 : vector<32x256xf32>, i32 -> vector<32x256xf32>
    %c11 = arith.constant 11 : index
    %c0_61 = arith.constant 0 : index
    %c0_62 = arith.constant 0 : index
    %124 = vector.load %arg4[%c11, %c0_61, %c0_62] : memref<18x32x256xf32, #tpu.memory_space<vmem>>, vector<1x32x256xf32>
    %125 = vector.shape_cast %124 : vector<1x32x256xf32> to vector<32x256xf32>
    %126 = arith.mulf %123, %125 : vector<32x256xf32>
    %127 = arith.addf %122, %126 : vector<32x256xf32>
    %c1_i32_63 = arith.constant 1 : i32
    %128 = tpu.dynamic_rotate %109 by %c1_i32_63 dim 1 : vector<32x256xf32>, i32 -> vector<32x256xf32>
    %c12 = arith.constant 12 : index
    %c0_64 = arith.constant 0 : index
    %c0_65 = arith.constant 0 : index
    %129 = vector.load %arg4[%c12, %c0_64, %c0_65] : memref<18x32x256xf32, #tpu.memory_space<vmem>>, vector<1x32x256xf32>
    %130 = vector.shape_cast %129 : vector<1x32x256xf32> to vector<32x256xf32>
    %131 = arith.mulf %128, %130 : vector<32x256xf32>
    %132 = arith.addf %127, %131 : vector<32x256xf32>
    %c255_i32_66 = arith.constant 255 : i32
    %133 = tpu.dynamic_rotate %109 by %c255_i32_66 dim 1 : vector<32x256xf32>, i32 -> vector<32x256xf32>
    %c14 = arith.constant 14 : index
    %c0_67 = arith.constant 0 : index
    %c0_68 = arith.constant 0 : index
    %134 = vector.load %arg4[%c14, %c0_67, %c0_68] : memref<18x32x256xf32, #tpu.memory_space<vmem>>, vector<1x32x256xf32>
    %135 = vector.shape_cast %134 : vector<1x32x256xf32> to vector<32x256xf32>
    %136 = arith.mulf %133, %135 : vector<32x256xf32>
    %137 = arith.addf %132, %136 : vector<32x256xf32>
    %c241_i32_69 = arith.constant 241 : i32
    %138 = tpu.dynamic_rotate %109 by %c241_i32_69 dim 1 : vector<32x256xf32>, i32 -> vector<32x256xf32>
    %c15 = arith.constant 15 : index
    %c0_70 = arith.constant 0 : index
    %c0_71 = arith.constant 0 : index
    %139 = vector.load %arg4[%c15, %c0_70, %c0_71] : memref<18x32x256xf32, #tpu.memory_space<vmem>>, vector<1x32x256xf32>
    %140 = vector.shape_cast %139 : vector<1x32x256xf32> to vector<32x256xf32>
    %141 = arith.mulf %138, %140 : vector<32x256xf32>
    %142 = arith.addf %137, %141 : vector<32x256xf32>
    %c240_i32_72 = arith.constant 240 : i32
    %143 = tpu.dynamic_rotate %109 by %c240_i32_72 dim 1 : vector<32x256xf32>, i32 -> vector<32x256xf32>
    %c16 = arith.constant 16 : index
    %c0_73 = arith.constant 0 : index
    %c0_74 = arith.constant 0 : index
    %144 = vector.load %arg4[%c16, %c0_73, %c0_74] : memref<18x32x256xf32, #tpu.memory_space<vmem>>, vector<1x32x256xf32>
    %145 = vector.shape_cast %144 : vector<1x32x256xf32> to vector<32x256xf32>
    %146 = arith.mulf %143, %145 : vector<32x256xf32>
    %147 = arith.addf %142, %146 : vector<32x256xf32>
    %c239_i32_75 = arith.constant 239 : i32
    %148 = tpu.dynamic_rotate %109 by %c239_i32_75 dim 1 : vector<32x256xf32>, i32 -> vector<32x256xf32>
    %c17 = arith.constant 17 : index
    %c0_76 = arith.constant 0 : index
    %c0_77 = arith.constant 0 : index
    %149 = vector.load %arg4[%c17, %c0_76, %c0_77] : memref<18x32x256xf32, #tpu.memory_space<vmem>>, vector<1x32x256xf32>
    %150 = vector.shape_cast %149 : vector<1x32x256xf32> to vector<32x256xf32>
    %151 = arith.mulf %148, %150 : vector<32x256xf32>
    %152 = arith.addf %147, %151 : vector<32x256xf32>
    %cst_78 = arith.constant dense<0.000000e+00> : vector<8x256xf32>
    %153 = tpu.matmul %86, %152, %cst_78 {dimension_numbers = #tpu.dot_dimension_numbers<[1], [0], [0], [1], [0, 0, 1, 1], [], []>} : vector<8x32xf32>, vector<32x256xf32>, vector<8x256xf32> -> vector<8x256xf32>
    %154 = vector.broadcast %87 : vector<8x1xf32> to vector<8x256xf32>
    %155 = arith.addf %153, %154 : vector<8x256xf32>
    %156 = vector.extract_strided_slice %83 {offsets = [0, 0], sizes = [8, 256], strides = [1, 1]} : vector<9x256xf32> to vector<8x256xf32>
    %157 = arith.addf %155, %156 : vector<8x256xf32>
    %c0_79 = arith.constant 0 : index
    %c0_80 = arith.constant 0 : index
    %c0_81 = arith.constant 0 : index
    %158 = vector.load %arg6[%c0_79, %c0_80, %c0_81] : memref<1x8x256xf32, #tpu.memory_space<vmem>>, vector<1x8x256xf32>
    %159 = vector.shape_cast %158 : vector<1x8x256xf32> to vector<8x256xf32>
    %160 = vector.shape_cast %157 : vector<8x256xf32> to vector<1x8x256xf32>
    tpu.vector_store %arg6[%c0_79, %c0_80, %c0_81], %160 {strides = array<i32>} : memref<1x8x256xf32, #tpu.memory_space<vmem>>, vector<1x8x256xf32>,
    return
  }
  func.func @transform_0(%arg0: i32) -> (i32, i32, i32) {
    %c0_i32 = arith.constant 0 : i32
    %c0_i32_0 = arith.constant 0 : i32
    %c0_i32_1 = arith.constant 0 : i32
    return %arg0, %c0_i32, %c0_i32_0 : i32, i32, i32
  }
  func.func @transform_1(%arg0: i32) -> (i32, i32, i32) {
    %c0_i32 = arith.constant 0 : i32
    %c0_i32_0 = arith.constant 0 : i32
    %c0_i32_1 = arith.constant 0 : i32
    return %arg0, %c0_i32, %c0_i32_0 : i32, i32, i32
  }
  func.func @transform_2(%arg0: i32) -> (i32, i32) {
    %c0_i32 = arith.constant 0 : i32
    %c0_i32_0 = arith.constant 0 : i32
    %c0_i32_1 = arith.constant 0 : i32
    return %c0_i32, %c0_i32_0 : i32, i32
  }
  func.func @transform_3(%arg0: i32) -> (i32, i32, i32) {
    %c0_i32 = arith.constant 0 : i32
    %c0_i32_0 = arith.constant 0 : i32
    %c0_i32_1 = arith.constant 0 : i32
    %c0_i32_2 = arith.constant 0 : i32
    return %c0_i32, %c0_i32_0, %c0_i32_1 : i32, i32, i32
  }
  func.func @transform_4(%arg0: i32) -> (i32, i32) {
    %c0_i32 = arith.constant 0 : i32
    %c0_i32_0 = arith.constant 0 : i32
    %c0_i32_1 = arith.constant 0 : i32
    return %c0_i32, %c0_i32_0 : i32, i32
  }
  func.func @transform_5(%arg0: i32) -> (i32, i32, i32) {
    %c0_i32 = arith.constant 0 : i32
    %c0_i32_0 = arith.constant 0 : i32
    %c0_i32_1 = arith.constant 0 : i32
    return %arg0, %c0_i32, %c0_i32_0 : i32, i32, i32
  }
}

</mosaic_0001>

<llo_original>
// kernel: dw_inverted_up_stage.1
$region0: #{dw_inverted_up_stage.1}
  #allocation0 [shape = 'u32[]', space=smem, size = 0x4, offset = 0x4, fixed_abs, tag = 'smem constant byte address 0x4 - core index']
  #allocation1 [shape = 'u32[144,128]{1,0:T(1,128)}', space=vmem, size = 0x12000, scoped, tag = 'internal scratch']
  %s0 = inlined_call_operand.vmem [shape: f32[2,8,64], index: 0, kind: input, shape index: {}]
  %s1 = inlined_call_operand.vmem [shape: f32[2,5,256], index: 1, kind: input, shape index: {}]
  %s2 = inlined_call_operand.vmem [shape: f32[64,256], index: 2, kind: input, shape index: {}]
  %s3 = inlined_call_operand.vmem [shape: f32[18,32,256], index: 3, kind: input, shape index: {}]
  %s4 = inlined_call_operand.vmem [shape: f32[176,128], index: 4, kind: input, shape index: {}]
  %s5 = inlined_call_operand.vmem [shape: f32[2,8,256], index: 5, kind: output, shape index: {}]
  %s6 = sld [smem:[#allocation0]]
  $region53: #{dw_inverted_up_stage.1} parent=0
    _
  %s8 = ssub.s32 1, %s6
  %s9 = scalar_select 0, %s8, %s6
  loop: start=0, step=1, limit=4
  $region2: #{dw_inverted_up_stage.1} parent=0 // loop_pre_header
    _
  $region3: #{dw_inverted_up_stage.1} parent=0 // loop_header
    %s11 = sphi 0, %s15
    %p12 = scmp.ge.s32.totalorder %s11, 4
    %s21 = sphi 0, %s23
    %s24 = sphi 0, %s21
    %s25 = sphi 0, %s24
    %s41 = sphi 0, %s25
    %s47 = sphi 0, %s49
    %s50 = sphi 0, %s47
    %s51 = sphi 0, %s50
    %s67 = sphi 0, %s51
    %s71 = sphi 0, %s71
    %s73 = sphi 0, %s71
    %s74 = sphi 0, %s73
    %s88 = sphi 0, %s74
    %s92 = sphi 0, %s92
    %s94 = sphi 0, %s92
    %s95 = sphi 0, %s94
    %s109 = sphi 0, %s95
    %s113 = sphi 0, %s113
    %s115 = sphi 0, %s113
    %s116 = sphi 0, %s115
    %s130 = sphi 0, %s116
    %s136 = sphi 0, %s138
    %s139 = sphi 0, %s136
    %s140 = sphi 0, %s139
    %s156 = sphi 0, %s140
  $region4: #{dw_inverted_up_stage.1} parent=0 // loop_header_branch
    %14 = sbr.rel (%p12) target = $region8
  $region5: #{dw_inverted_up_stage.1} parent=0 // loop_body
    %s16 = ssub.s32 %s11, 1
    %s17 = ssub.s32 %s11, 2
    %s18 = sadd.s32 %s11, 1
    %s19 = ssub.s32 %s11, %s18
    %p20 = scmp.eq.s32.totalorder %s19, 0
    %s22 = sadd.s32 %s21, 1
    %s23 = scalar_select %p20, %s21, %s22
    %p26 = pneg %p20
    %p27 = scmp.eq.s32.totalorder %s11, 1
    %p28 = por %p26, %p27
    %p29 = scmp.ne.s32.totalorder %s21, %s24
    %p30 = scmp.eq.s32.totalorder %s11, 0
    %p31 = por %p29, %p30
    %p32 = scmp.ne.s32.totalorder %s21, %s24
    %p33 = scmp.eq.s32.totalorder %s16, 1
    %p34 = por %p32, %p33
    %p35 = scmp.ne.s32.totalorder %s24, %s25
    %p36 = scmp.eq.s32.totalorder %s16, 0
    %p37 = por %p35, %p36
    %p38 = scmp.ne.s32.totalorder %s24, %s25
    %p39 = scmp.eq.s32.totalorder %s17, 1
    %p40 = por %p38, %p39
    %p42 = scmp.ne.s32.totalorder %s25, %s41
    %p43 = scmp.eq.s32.totalorder %s17, 0
    %p44 = por %p42, %p43
    %s45 = ssub.s32 %s11, %s18
    %p46 = scmp.eq.s32.totalorder %s45, 0
    %s48 = sadd.s32 %s47, 1
    %s49 = scalar_select %p46, %s47, %s48
    %p52 = pneg %p46
    %p53 = scmp.eq.s32.totalorder %s11, 1
    %p54 = por %p52, %p53
    %p55 = scmp.ne.s32.totalorder %s47, %s50
    %p56 = scmp.eq.s32.totalorder %s11, 0
    %p57 = por %p55, %p56
    %p58 = scmp.ne.s32.totalorder %s47, %s50
    %p59 = scmp.eq.s32.totalorder %s16, 1
    %p60 = por %p58, %p59
    %p61 = scmp.ne.s32.totalorder %s50, %s51
    %p62 = scmp.eq.s32.totalorder %s16, 0
    %p63 = por %p61, %p62
    %p64 = scmp.ne.s32.totalorder %s50, %s51
    %p65 = scmp.eq.s32.totalorder %s17, 1
    %p66 = por %p64, %p65
    %p68 = scmp.ne.s32.totalorder %s51, %s67
    %p69 = scmp.eq.s32.totalorder %s17, 0
    %p70 = por %p68, %p69
    %s72 = sadd.s32 %s71, 1
    %p75 = scmp.eq.s32.totalorder %s11, 1
    %p76 = scmp.ne.s32.totalorder %s71, %s73
    %p77 = scmp.eq.s32.totalorder %s11, 0
    %p78 = por %p76, %p77
    %p79 = scmp.ne.s32.totalorder %s71, %s73
    %p80 = scmp.eq.s32.totalorder %s16, 1
    %p81 = por %p79, %p80
    %p82 = scmp.ne.s32.totalorder %s73, %s74
    %p83 = scmp.eq.s32.totalorder %s16, 0
    %p84 = por %p82, %p83
    %p85 = scmp.ne.s32.totalorder %s73, %s74
    %p86 = scmp.eq.s32.totalorder %s17, 1
    %p87 = por %p85, %p86
    %p89 = scmp.ne.s32.totalorder %s74, %s88
    %p90 = scmp.eq.s32.totalorder %s17, 0
    %p91 = por %p89, %p90
    %s93 = sadd.s32 %s92, 1
    %p96 = scmp.eq.s32.totalorder %s11, 1
    %p97 = scmp.ne.s32.totalorder %s92, %s94
    %p98 = scmp.eq.s32.totalorder %s11, 0
    %p99 = por %p97, %p98
    %p100 = scmp.ne.s32.totalorder %s92, %s94
    %p101 = scmp.eq.s32.totalorder %s16, 1
    %p102 = por %p100, %p101
    %p103 = scmp.ne.s32.totalorder %s94, %s95
    %p104 = scmp.eq.s32.totalorder %s16, 0
    %p105 = por %p103, %p104
    %p106 = scmp.ne.s32.totalorder %s94, %s95
    %p107 = scmp.eq.s32.totalorder %s17, 1
    %p108 = por %p106, %p107
    %p110 = scmp.ne.s32.totalorder %s95, %s109
    %p111 = scmp.eq.s32.totalorder %s17, 0
    %p112 = por %p110, %p111
    %s114 = sadd.s32 %s113, 1
    %p117 = scmp.eq.s32.totalorder %s11, 1
    %p118 = scmp.ne.s32.totalorder %s113, %s115
    %p119 = scmp.eq.s32.totalorder %s11, 0
    %p120 = por %p118, %p119
    %p121 = scmp.ne.s32.totalorder %s113, %s115
    %p122 = scmp.eq.s32.totalorder %s16, 1
    %p123 = por %p121, %p122
    %p124 = scmp.ne.s32.totalorder %s115, %s116
    %p125 = scmp.eq.s32.totalorder %s16, 0
    %p126 = por %p124, %p125
    %p127 = scmp.ne.s32.totalorder %s115, %s116
    %p128 = scmp.eq.s32.totalorder %s17, 1
    %p129 = por %p127, %p128
    %p131 = scmp.ne.s32.totalorder %s116, %s130
    %p132 = scmp.eq.s32.totalorder %s17, 0
    %p133 = por %p131, %p132
    %s134 = ssub.s32 %s11, %s18
    %p135 = scmp.eq.s32.totalorder %s134, 0
    %s137 = sadd.s32 %s136, 1
    %s138 = scalar_select %p135, %s136, %s137
    %p141 = pneg %p135
    %p142 = scmp.eq.s32.totalorder %s11, 1
    %p143 = por %p141, %p142
    %p144 = scmp.ne.s32.totalorder %s136, %s139
    %p145 = scmp.eq.s32.totalorder %s11, 0
    %p146 = por %p144, %p145
    %p147 = scmp.ne.s32.totalorder %s136, %s139
    %p148 = scmp.eq.s32.totalorder %s16, 1
    %p149 = por %p147, %p148
    %p150 = scmp.ne.s32.totalorder %s139, %s140
    %p151 = scmp.eq.s32.totalorder %s16, 0
    %p152 = por %p150, %p151
    %p153 = scmp.ne.s32.totalorder %s139, %s140
    %p154 = scmp.eq.s32.totalorder %s17, 1
    %p155 = por %p153, %p154
    %p157 = scmp.ne.s32.totalorder %s140, %s156
    %p158 = scmp.eq.s32.totalorder %s17, 0
    %p159 = por %p157, %p158
    %p160 = scmp.le.s32.totalorder 1, %s11
    %p161 = scmp.lt.s32.totalorder %s11, 3
    %p162 = pnand %p160, %p161
    %p163 = pneg %p162
    // Predicated region
    $region9: #{dw_inverted_up_stage.1} parent=5 // pred_check
      _
    $region10: #{dw_inverted_up_stage.1} parent=5 // pred_check_branch
      %165 = sbr.rel (%p162) target = $region12
    $region11: #{dw_inverted_up_stage.1} parent=5 // pred_region
      %s166 = ssub.s32 %s11, 1
      // Predicated region
      $region13: #{dw_inverted_up_stage.1} parent=11 // pred_check
        %p167 = pneg %p84
      $region14: #{dw_inverted_up_stage.1} parent=11 // pred_check_branch
        %169 = sbr.rel (%p167) target = $region16
      $region15: #{dw_inverted_up_stage.1} parent=11 // pred_region
        _
      $region16: #{dw_inverted_up_stage.1} parent=11 // pred_fallthru
        _
      // Predicated region
      $region17: #{dw_inverted_up_stage.1} parent=11 // pred_check
        %p170 = pneg %p105
      $region18: #{dw_inverted_up_stage.1} parent=11 // pred_check_branch
        %172 = sbr.rel (%p170) target = $region20
      $region19: #{dw_inverted_up_stage.1} parent=11 // pred_region
        _
      $region20: #{dw_inverted_up_stage.1} parent=11 // pred_fallthru
        _
      // Predicated region
      $region21: #{dw_inverted_up_stage.1} parent=11 // pred_check
        %p173 = pneg %p126
      $region22: #{dw_inverted_up_stage.1} parent=11 // pred_check_branch
        %175 = sbr.rel (%p173) target = $region24
      $region23: #{dw_inverted_up_stage.1} parent=11 // pred_region
        _
      $region24: #{dw_inverted_up_stage.1} parent=11 // pred_fallthru
        _
    $region12: #{dw_inverted_up_stage.1} parent=5 // pred_fallthru
      _
    %p176 = scmp.lt.s32.totalorder %s11, 2
    // Predicated region
    $region25: #{dw_inverted_up_stage.1} parent=5 // pred_check
      %p177 = pneg %p176
    $region26: #{dw_inverted_up_stage.1} parent=5 // pred_check_branch
      %179 = sbr.rel (%p177) target = $region28
    $region27: #{dw_inverted_up_stage.1} parent=5 // pred_region
      // Predicated region
      $region29: #{dw_inverted_up_stage.1} parent=27 // pred_check
        %p180 = pneg %p31
      $region30: #{dw_inverted_up_stage.1} parent=27 // pred_check_branch
        %182 = sbr.rel (%p180) target = $region32
      $region31: #{dw_inverted_up_stage.1} parent=27 // pred_region
        %p183 = scmp.lt.s32.totalorder %s11, 1
        %s184 = scalar_select %p183, %s11, 1
        %s185 = smul.addr %s184, 8
        %s186 = scalar_lea.vmem %s0, %s185
      $region32: #{dw_inverted_up_stage.1} parent=27 // pred_fallthru
        _
      // Predicated region
      $region33: #{dw_inverted_up_stage.1} parent=27 // pred_check
        %p187 = pneg %p57
      $region34: #{dw_inverted_up_stage.1} parent=27 // pred_check_branch
        %189 = sbr.rel (%p187) target = $region36
      $region35: #{dw_inverted_up_stage.1} parent=27 // pred_region
        %p190 = scmp.lt.s32.totalorder %s11, 1
        %s191 = scalar_select %p190, %s11, 1
        %s192 = smul.addr %s191, 2
        %s193 = smul.addr %s192, 8
        %s194 = scalar_lea.vmem %s1, %s193
      $region36: #{dw_inverted_up_stage.1} parent=27 // pred_fallthru
        _
    $region28: #{dw_inverted_up_stage.1} parent=5 // pred_fallthru
      _
    %p195 = scmp.le.s32.totalorder 1, %s11
    %p196 = scmp.lt.s32.totalorder %s11, 3
    %p197 = pnand %p195, %p196
    %p198 = pneg %p197
    // Predicated region
    $region37: #{dw_inverted_up_stage.1} parent=5 // pred_check
      _
    $region38: #{dw_inverted_up_stage.1} parent=5 // pred_check_branch
      %200 = sbr.rel (%p197) target = $region40
    $region39: #{dw_inverted_up_stage.1} parent=5 // pred_region
      %s201 = ssub.s32 %s11, 1
      %p202 = scmp.lt.s32.totalorder %s16, 1
      %s203 = scalar_select %p202, %s16, 1
      %s204 = smul.addr %s203, 8
      %s205 = scalar_lea.vmem %s0, %s204
      %p206 = pneg %p37
      %p207 = pneg %p34
      %p208 = scmp.lt.s32.totalorder %s16, 1
      %s209 = scalar_select %p208, %s16, 1
      %s210 = smul.addr %s209, 2
      %s211 = smul.addr %s210, 8
      %s212 = scalar_lea.vmem %s1, %s211
      %p213 = pneg %p63
      %p214 = pneg %p60
      %p215 = pneg %p84
      %p216 = pneg %p81
      %p217 = pneg %p105
      %p218 = pneg %p102
      %p219 = pneg %p126
      %p220 = pneg %p123
      %p221 = pneg %p152
      %p222 = pneg %p149
      %p223 = scmp.lt.s32.totalorder %s16, 1
      %s224 = scalar_select %p223, %s16, 1
      %s225 = smul.addr %s224, 2
      %s226 = smul.addr %s225, 8
      %s227 = scalar_lea.vmem %s5, %s226
      %p228 = scmp.lt.s32.totalorder %s16, 1
      %s229 = scalar_select %p228, %s16, 1
      %s230 = smul.addr %s229, 8
      %s231 = scalar_lea.vmem %s0, %s230
      %p232 = scmp.lt.s32.totalorder %s16, 1
      %s233 = scalar_select %p232, %s16, 1
      %s234 = smul.addr %s233, 2
      %s235 = smul.addr %s234, 8
      %s236 = scalar_lea.vmem %s1, %s235
      %p237 = scmp.lt.s32.totalorder %s16, 1
      %s238 = scalar_select %p237, %s16, 1
      %s239 = smul.addr %s238, 2
      %s240 = smul.addr %s239, 8
      %s241 = scalar_lea.vmem %s5, %s240
      %v242 = vld [vmem:[%s236] sm:$0x1f]
      %v243 = vld [vmem:[%s236 + $0x8] sm:$0x1f]
      %v244 = vld [vmem:[%s231] sm:$0xff]
      %v245 = vld [vmem:[%s2] sm:$0xff]
      %v246 = vld [vmem:[%s2 + $0x8] sm:$0xff]
      %v247 = vld [vmem:[%s2 + $0x10] sm:$0xff]
      %v248 = vld [vmem:[%s2 + $0x18] sm:$0xff]
      %v249 = vld [vmem:[%s2 + $0x20] sm:$0xff]
      %v250 = vld [vmem:[%s2 + $0x28] sm:$0xff]
      %v251 = vld [vmem:[%s2 + $0x30] sm:$0xff]
      %v252 = vld [vmem:[%s2 + $0x38] sm:$0xff]
      %v253 = vld [vmem:[%s2 + $0x40] sm:$0xff]
      %v254 = vld [vmem:[%s2 + $0x48] sm:$0xff]
      %v255 = vld [vmem:[%s2 + $0x50] sm:$0xff]
      %v256 = vld [vmem:[%s2 + $0x58] sm:$0xff]
      %v257 = vld [vmem:[%s2 + $0x60] sm:$0xff]
      %v258 = vld [vmem:[%s2 + $0x68] sm:$0xff]
      %v259 = vld [vmem:[%s2 + $0x70] sm:$0xff]
      %v260 = vld [vmem:[%s2 + $0x78] sm:$0xff]
      %vm261 = vcmask 523264
      %v263 = vsel %vm261, %v244, 0
      %265 = vmatprep.subr.mxu0 %v246
      %266 = vmatpush1.msra.mxu0 %v245
      %267 = vmatprep.subr.mxu0 %v248
      %268 = vmatpush1.msra.mxu0 %v247
      %269 = vmatprep.subr.mxu0 %v250
      %270 = vmatpush1.msra.mxu0 %v249
      %271 = vmatprep.subr.mxu0 %v252
      %272 = vmatpush1.msra.mxu0 %v251
      %273 = vmatprep.subr.mxu0 %v254
      %274 = vmatpush1.msra.mxu0 %v253
      %275 = vmatprep.subr.mxu0 %v256
      %276 = vmatpush1.msra.mxu0 %v255
      %277 = vmatprep.subr.mxu0 %v258
      %278 = vmatpush1.msra.mxu0 %v257
      %279 = vmatprep.subr.mxu0 %v260
      %280 = vmatpush1.msra.mxu0 %v259
      %281 = vmatprep.subr.mxu0 0.0
      %282 = vmatpush1.msra.mxu0 0.0
      %283 = vmatprep.subr.mxu0 0.0
      %284 = vmatpush1.msra.mxu0 0.0
      %285 = vmatprep.subr.mxu0 0.0
      %286 = vmatpush1.msra.mxu0 0.0
      %287 = vmatprep.subr.mxu0 0.0
      %288 = vmatpush1.msra.mxu0 0.0
      %289 = vmatprep.subr.mxu0 0.0
      %290 = vmatpush1.msra.mxu0 0.0
      %291 = vmatprep.subr.mxu0 0.0
      %292 = vmatpush1.msra.mxu0 0.0
      %293 = vmatprep.subr.mxu0 0.0
      %294 = vmatpush1.msra.mxu0 0.0
      %295 = vmatprep.subr.mxu0 0.0
      %296 = vmatpush1.msra.mxu0 0.0
      %297 = vmatprep.subr.mxu0 0.0
      %298 = vmatpush1.msra.mxu0 0.0
      %299 = vmatprep.subr.mxu0 0.0
      %300 = vmatpush1.msra.mxu0 0.0
      %301 = vmatprep.subr.mxu0 0.0
      %302 = vmatpush1.msra.mxu0 0.0
      %303 = vmatprep.subr.mxu0 0.0
      %304 = vmatpush1.msra.mxu0 0.0
      %305 = vmatprep.subr.mxu0 0.0
      %306 = vmatpush1.msra.mxu0 0.0
      %307 = vmatprep.subr.mxu0 0.0
      %308 = vmatpush1.msra.mxu0 0.0
      %309 = vmatprep.subr.mxu0 0.0
      %310 = vmatpush1.msra.mxu0 0.0
      %311 = vmatprep.subr.mxu0 0.0
      %312 = vmatpush1.msra.mxu0 0.0
      %313 = vmatprep.subr.mxu0 0.0
      %314 = vmatpush1.msra.mxu0 0.0
      %315 = vmatprep.subr.mxu0 0.0
      %316 = vmatpush1.msra.mxu0 0.0
      %317 = vmatprep.subr.mxu0 0.0
      %318 = vmatpush1.msra.mxu0 0.0
      %319 = vmatprep.subr.mxu0 0.0
      %320 = vmatpush1.msra.mxu0 0.0
      %321 = vmatprep.subr.mxu0 0.0
      %322 = vmatpush1.msra.mxu0 0.0
      %323 = vmatprep.subr.mxu0 0.0
      %324 = vmatpush1.msra.mxu0 0.0
      %325 = vmatprep.subr.mxu0 0.0
      %326 = vmatpush1.msra.mxu0 0.0
      %327 = vmatprep.subr.mxu0 0.0
      %328 = vmatpush1.msra.mxu0 0.0
      %329 = vmatprep.mubr.f32.mxu0 0.0
      %330 = vmatmul.mubr.f32.gmra.mrb[0].mxu0 %v263
      %v331 = vpop.f32.mrb[0].mxu0
      %v332 = vadd.f32 0.0, %v331
      %v333 = vpop.f32.mrb[0].mxu0
      %v334 = vadd.f32 0.0, %v333
      %335 = vdwg.mxu0
      %v336 = vld [vmem:[%s4] sm:$0xff]
      %v337 = vld [vmem:[%s4 + $0x8] sm:$0xff]
      %v338 = vld [vmem:[%s4 + $0x10] sm:$0xff]
      %v339 = vld [vmem:[%s4 + $0x18] sm:$0xff]
      %v340 = vld [vmem:[%s4 + $0x20] sm:$0xff]
      %v341 = vld [vmem:[%s4 + $0x28] sm:$0x1]
      %v342 = vld [vmem:[%s4 + $0x30] sm:$0xff]
      %v343 = vld [vmem:[%s4 + $0x38] sm:$0xff]
      %v344 = vld [vmem:[%s4 + $0x40] sm:$0xff]
      %v345 = vld [vmem:[%s4 + $0x48] sm:$0xff]
      %v346 = vld [vmem:[%s4 + $0x50] sm:$0xff]
      %v347 = vld [vmem:[%s4 + $0x58] sm:$0x1]
      %vm348 = vcmask 64512
      %v350 = vsel %vm348, %v342, 0
      %v353 = vsel %vm348, %v343, 0
      %v356 = vsel %vm348, %v344, 0
      %v359 = vsel %vm348, %v345, 0
      %v362 = vsel %vm348, %v346, 0
      %v365 = vsel %vm348, %v347, 0
      %367 = vmatprep.subr.mxu0 %v334
      %368 = vmatpush1.msra.mxu0 %v332
      %369 = vmatprep.subr.mxu0 0.0
      %370 = vmatpush1.msra.mxu0 0.0
      %371 = vmatprep.subr.mxu0 0.0
      %372 = vmatpush1.msra.mxu0 0.0
      %373 = vmatprep.subr.mxu0 0.0
      %374 = vmatpush1.msra.mxu0 0.0
      %375 = vmatprep.subr.mxu0 0.0
      %376 = vmatpush1.msra.mxu0 0.0
      %377 = vmatprep.subr.mxu0 0.0
      %378 = vmatpush1.msra.mxu0 0.0
      %379 = vmatprep.subr.mxu0 0.0
      %380 = vmatpush1.msra.mxu0 0.0
      %381 = vmatprep.subr.mxu0 0.0
      %382 = vmatpush1.msra.mxu0 0.0
      %383 = vmatprep.subr.mxu0 0.0
      %384 = vmatpush1.msra.mxu0 0.0
      %385 = vmatprep.subr.mxu0 0.0
      %386 = vmatpush1.msra.mxu0 0.0
      %387 = vmatprep.subr.mxu0 0.0
      %388 = vmatpush1.msra.mxu0 0.0
      %389 = vmatprep.subr.mxu0 0.0
      %390 = vmatpush1.msra.mxu0 0.0
      %391 = vmatprep.subr.mxu0 0.0
      %392 = vmatpush1.msra.mxu0 0.0
      %393 = vmatprep.subr.mxu0 0.0
      %394 = vmatpush1.msra.mxu0 0.0
      %395 = vmatprep.subr.mxu0 0.0
      %396 = vmatpush1.msra.mxu0 0.0
      %397 = vmatprep.subr.mxu0 0.0
      %398 = vmatpush1.msra.mxu0 0.0
      %399 = vmatprep.subr.mxu0 0.0
      %400 = vmatpush1.msra.mxu0 0.0
      %401 = vmatprep.subr.mxu0 0.0
      %402 = vmatpush1.msra.mxu0 0.0
      %403 = vmatprep.subr.mxu0 0.0
      %404 = vmatpush1.msra.mxu0 0.0
      %405 = vmatprep.subr.mxu0 0.0
      %406 = vmatpush1.msra.mxu0 0.0
      %407 = vmatprep.subr.mxu0 0.0
      %408 = vmatpush1.msra.mxu0 0.0
      %409 = vmatprep.subr.mxu0 0.0
      %410 = vmatpush1.msra.mxu0 0.0
      %411 = vmatprep.subr.mxu0 0.0
      %412 = vmatpush1.msra.mxu0 0.0
      %413 = vmatprep.subr.mxu0 0.0
      %414 = vmatpush1.msra.mxu0 0.0
      %415 = vmatprep.subr.mxu0 0.0
      %416 = vmatpush1.msra.mxu0 0.0
      %417 = vmatprep.subr.mxu0 0.0
      %418 = vmatpush1.msra.mxu0 0.0
      %419 = vmatprep.subr.mxu0 0.0
      %420 = vmatpush1.msra.mxu0 0.0
      %421 = vmatprep.subr.mxu0 0.0
      %422 = vmatpush1.msra.mxu0 0.0
      %423 = vmatprep.subr.mxu0 0.0
      %424 = vmatpush1.msra.mxu0 0.0
      %425 = vmatprep.subr.mxu0 0.0
      %426 = vmatpush1.msra.mxu0 0.0
      %427 = vmatprep.subr.mxu0 0.0
      %428 = vmatpush1.msra.mxu0 0.0
      %429 = vmatprep.subr.mxu0 0.0
      %430 = vmatpush1.msra.mxu0 0.0
      %431 = vmatprep.mubr.f32.mxu0 0.0
      %432 = vmatmul.mubr.f32.gmra.mrb[0].mxu0 %v350
      %v433 = vpop.f32.mrb[0].mxu0
      %v434 = vadd.f32 0.0, %v433
      %v435 = vpop.f32.mrb[0].mxu0
      %v436 = vadd.f32 0.0, %v435
      %437 = vmatprep.mubr.f32.mxu0 0.0
      %438 = vmatmul.mubr.f32.gmra.mrb[0].mxu0 %v353
      %v439 = vpop.f32.mrb[0].mxu0
      %v440 = vadd.f32 0.0, %v439
      %v441 = vpop.f32.mrb[0].mxu0
      %v442 = vadd.f32 0.0, %v441
      %443 = vmatprep.mubr.f32.mxu0 0.0
      %444 = vmatmul.mubr.f32.gmra.mrb[0].mxu0 %v356
      %v445 = vpop.f32.mrb[0].mxu0
      %v446 = vadd.f32 0.0, %v445
      %v447 = vpop.f32.mrb[0].mxu0
      %v448 = vadd.f32 0.0, %v447
      %449 = vmatprep.mubr.f32.mxu0 0.0
      %450 = vmatmul.mubr.f32.gmra.mrb[0].mxu0 %v359
      %v451 = vpop.f32.mrb[0].mxu0
      %v452 = vadd.f32 0.0, %v451
      %v453 = vpop.f32.mrb[0].mxu0
      %v454 = vadd.f32 0.0, %v453
      %455 = vmatprep.mubr.f32.mxu0 0.0
      %456 = vmatmul.mubr.f32.gmra.mrb[0].mxu0 %v362
      %v457 = vpop.f32.mrb[0].mxu0
      %v458 = vadd.f32 0.0, %v457
      %v459 = vpop.f32.mrb[0].mxu0
      %v460 = vadd.f32 0.0, %v459
      %461 = vmatprep.mubr.f32.mxu0 0.0
      %462 = vmatmul.mubr.f32.gmra.mrb[0].mxu0 %v365
      %v463 = vpop.f32.mrb[0].mxu0
      %v464 = vadd.f32 0.0, %v463
      %v465 = vpop.f32.mrb[0].mxu0
      %v466 = vadd.f32 0.0, %v465
      %467 = vdwg.mxu0
      %vm468 = vcmask 39936
      %v470 = vsel %vm468, %v336, 0
      %v473 = vsel %vm468, %v337, 0
      %v476 = vsel %vm468, %v338, 0
      %v479 = vsel %vm468, %v339, 0
      %v482 = vsel %vm468, %v340, 0
      %v485 = vsel %vm468, %v341, 0
      %vm487 = vcmask 1044480
      %v489 = vsel %vm487, %v242, 0
      %v492 = vsel %vm487, %v243, 0
      %494 = vmatprep.subr.mxu0 %v492
      %495 = vmatpush1.msra.mxu0 %v489
      %496 = vmatprep.subr.mxu0 0.0
      %497 = vmatpush1.msra.mxu0 0.0
      %498 = vmatprep.subr.mxu0 0.0
      %499 = vmatpush1.msra.mxu0 0.0
      %500 = vmatprep.subr.mxu0 0.0
      %501 = vmatpush1.msra.mxu0 0.0
      %502 = vmatprep.subr.mxu0 0.0
      %503 = vmatpush1.msra.mxu0 0.0
      %504 = vmatprep.subr.mxu0 0.0
      %505 = vmatpush1.msra.mxu0 0.0
      %506 = vmatprep.subr.mxu0 0.0
      %507 = vmatpush1.msra.mxu0 0.0
      %508 = vmatprep.subr.mxu0 0.0
      %509 = vmatpush1.msra.mxu0 0.0
      %510 = vmatprep.subr.mxu0 0.0
      %511 = vmatpush1.msra.mxu0 0.0
      %512 = vmatprep.subr.mxu0 0.0
      %513 = vmatpush1.msra.mxu0 0.0
      %514 = vmatprep.subr.mxu0 0.0
      %515 = vmatpush1.msra.mxu0 0.0
      %516 = vmatprep.subr.mxu0 0.0
      %517 = vmatpush1.msra.mxu0 0.0
      %518 = vmatprep.subr.mxu0 0.0
      %519 = vmatpush1.msra.mxu0 0.0
      %520 = vmatprep.subr.mxu0 0.0
      %521 = vmatpush1.msra.mxu0 0.0
      %522 = vmatprep.subr.mxu0 0.0
      %523 = vmatpush1.msra.mxu0 0.0
      %524 = vmatprep.subr.mxu0 0.0
      %525 = vmatpush1.msra.mxu0 0.0
      %526 = vmatprep.subr.mxu0 0.0
      %527 = vmatpush1.msra.mxu0 0.0
      %528 = vmatprep.subr.mxu0 0.0
      %529 = vmatpush1.msra.mxu0 0.0
      %530 = vmatprep.subr.mxu0 0.0
      %531 = vmatpush1.msra.mxu0 0.0
      %532 = vmatprep.subr.mxu0 0.0
      %533 = vmatpush1.msra.mxu0 0.0
      %534 = vmatprep.subr.mxu0 0.0
      %535 = vmatpush1.msra.mxu0 0.0
      %536 = vmatprep.subr.mxu0 0.0
      %537 = vmatpush1.msra.mxu0 0.0
      %538 = vmatprep.subr.mxu0 0.0
      %539 = vmatpush1.msra.mxu0 0.0
      %540 = vmatprep.subr.mxu0 0.0
      %541 = vmatpush1.msra.mxu0 0.0
      %542 = vmatprep.subr.mxu0 0.0
      %543 = vmatpush1.msra.mxu0 0.0
      %544 = vmatprep.subr.mxu0 0.0
      %545 = vmatpush1.msra.mxu0 0.0
      %546 = vmatprep.subr.mxu0 0.0
      %547 = vmatpush1.msra.mxu0 0.0
      %548 = vmatprep.subr.mxu0 0.0
      %549 = vmatpush1.msra.mxu0 0.0
      %550 = vmatprep.subr.mxu0 0.0
      %551 = vmatpush1.msra.mxu0 0.0
      %552 = vmatprep.subr.mxu0 0.0
      %553 = vmatpush1.msra.mxu0 0.0
      %554 = vmatprep.subr.mxu0 0.0
      %555 = vmatpush1.msra.mxu0 0.0
      %556 = vmatprep.subr.mxu0 0.0
      %557 = vmatpush1.msra.mxu0 0.0
      %558 = vmatprep.mubr.f32.mxu0 0.0
      %559 = vmatmul.mubr.f32.gmra.mrb[0].mxu0 %v470
      %v560 = vpop.f32.mrb[0].mxu0
      %v561 = vadd.f32 %v434, %v560
      %v562 = vpop.f32.mrb[0].mxu0
      %v563 = vadd.f32 %v436, %v562
      %564 = vmatprep.mubr.f32.mxu0 0.0
      %565 = vmatmul.mubr.f32.gmra.mrb[0].mxu0 %v473
      %v566 = vpop.f32.mrb[0].mxu0
      %v567 = vadd.f32 %v440, %v566
      %v568 = vpop.f32.mrb[0].mxu0
      %v569 = vadd.f32 %v442, %v568
      %570 = vmatprep.mubr.f32.mxu0 0.0
      %571 = vmatmul.mubr.f32.gmra.mrb[0].mxu0 %v476
      %v572 = vpop.f32.mrb[0].mxu0
      %v573 = vadd.f32 %v446, %v572
      %v574 = vpop.f32.mrb[0].mxu0
      %v575 = vadd.f32 %v448, %v574
      %576 = vmatprep.mubr.f32.mxu0 0.0
      %577 = vmatmul.mubr.f32.gmra.mrb[0].mxu0 %v479
      %v578 = vpop.f32.mrb[0].mxu0
      %v579 = vadd.f32 %v452, %v578
      %v580 = vpop.f32.mrb[0].mxu0
      %v581 = vadd.f32 %v454, %v580
      %582 = vmatprep.mubr.f32.mxu0 0.0
      %583 = vmatmul.mubr.f32.gmra.mrb[0].mxu0 %v482
      %v584 = vpop.f32.mrb[0].mxu0
      %v585 = vadd.f32 %v458, %v584
      %v586 = vpop.f32.mrb[0].mxu0
      %v587 = vadd.f32 %v460, %v586
      %588 = vmatprep.mubr.f32.mxu0 0.0
      %589 = vmatmul.mubr.f32.gmra.mrb[0].mxu0 %v485
      %v590 = vpop.f32.mrb[0].mxu0
      %v591 = vadd.f32 %v464, %v590
      %v592 = vpop.f32.mrb[0].mxu0
      %v593 = vadd.f32 %v466, %v592
      %594 = vdwg.mxu0
      %v595 = vld [vmem:[%s4 + $0x60] sm:$0xff]
      %v596 = vld [vmem:[%s4 + $0x68] sm:$0x1]
      %v597 = vld [vmem:[%s4 + $0x70] sm:$0xff]
      %v598 = vld [vmem:[%s4 + $0x78] sm:$0x1]
      %v599 = vadd.f32 %v561, %v563
      %600 = vadd.xlane.f32.xlu0 %v599
      %v601 = vpop.xlane.xlu0 %600
      %v602 = vadd.f32 %v567, %v569
      %603 = vadd.xlane.f32.xlu0 %v602
      %v604 = vpop.xlane.xlu0 %603
      %v605 = vadd.f32 %v573, %v575
      %606 = vadd.xlane.f32.xlu0 %v605
      %v607 = vpop.xlane.xlu0 %606
      %v608 = vadd.f32 %v579, %v581
      %609 = vadd.xlane.f32.xlu0 %v608
      %v610 = vpop.xlane.xlu0 %609
      %v611 = vmul.f32 %v601, 0.00390625
      %v612 = vmul.f32 %v604, 0.00390625
      %v613 = vmul.f32 %v607, 0.00390625
      %v614 = vmul.f32 %v610, 0.00390625
      %v615 = vmul.f32 %v561, %v561
      %v616 = vmul.f32 %v563, %v563
      %v617 = vmul.f32 %v567, %v567
      %v618 = vmul.f32 %v569, %v569
      %v619 = vmul.f32 %v573, %v573
      %v620 = vmul.f32 %v575, %v575
      %v621 = vmul.f32 %v579, %v579
      %v622 = vmul.f32 %v581, %v581
      %v623 = vadd.f32 %v615, %v616
      %624 = vadd.xlane.f32.xlu0 %v623
      %v625 = vpop.xlane.xlu0 %624
      %v626 = vadd.f32 %v617, %v618
      %627 = vadd.xlane.f32.xlu0 %v626
      %v628 = vpop.xlane.xlu0 %627
      %v629 = vadd.f32 %v619, %v620
      %630 = vadd.xlane.f32.xlu0 %v629
      %v631 = vpop.xlane.xlu0 %630
      %v632 = vadd.f32 %v621, %v622
      %633 = vadd.xlane.f32.xlu0 %v632
      %v634 = vpop.xlane.xlu0 %633
      %v635 = vmul.f32 %v625, 0.00390625
      %v636 = vmul.f32 %v628, 0.00390625
      %v637 = vmul.f32 %v631, 0.00390625
      %v638 = vmul.f32 %v634, 0.00390625
      %v639 = vmul.f32 %v611, %v611
      %v640 = vmul.f32 %v612, %v612
      %v641 = vmul.f32 %v613, %v613
      %v642 = vmul.f32 %v614, %v614
      %v643 = vsub.f32 %v635, %v639
      %v644 = vsub.f32 %v636, %v640
      %v645 = vsub.f32 %v637, %v641
      %v646 = vsub.f32 %v638, %v642
      %v647 = vmax.f32 %v643, 0.0
      %v648 = vmax.f32 %v644, 0.0
      %v649 = vmax.f32 %v645, 0.0
      %v650 = vmax.f32 %v646, 0.0
      %v651 = vsub.f32 %v561, %v611
      %v652 = vsub.f32 %v563, %v611
      %v653 = vsub.f32 %v567, %v612
      %v654 = vsub.f32 %v569, %v612
      %v655 = vsub.f32 %v573, %v613
      %v656 = vsub.f32 %v575, %v613
      %v657 = vsub.f32 %v579, %v614
      %v658 = vsub.f32 %v581, %v614
      %v659 = vadd.f32 %v647, 1e-05
      %v660 = vadd.f32 %v648, 1e-05
      %v661 = vadd.f32 %v649, 1e-05
      %v662 = vadd.f32 %v650, 1e-05
      %v663 = vrsqrt.pop %v659
      %v664 = vrsqrt.pop %v660
      %v665 = vrsqrt.pop %v661
      %v666 = vrsqrt.pop %v662
      %v667 = vmul.f32 %v651, %v663
      %v668 = vmul.f32 %v652, %v663
      %v669 = vmul.f32 %v653, %v664
      %v670 = vmul.f32 %v654, %v664
      %v671 = vmul.f32 %v655, %v665
      %v672 = vmul.f32 %v656, %v665
      %v673 = vmul.f32 %v657, %v666
      %v674 = vmul.f32 %v658, %v666
      %v675 = vmax.f32 %v667, 0.0
      %v676 = vmax.f32 %v668, 0.0
      %v677 = vmax.f32 %v669, 0.0
      %v678 = vmax.f32 %v670, 0.0
      %v679 = vmax.f32 %v671, 0.0
      %v680 = vmax.f32 %v672, 0.0
      %v681 = vmax.f32 %v673, 0.0
      %v682 = vmax.f32 %v674, 0.0
      %s683 = scalar_lea.vmem %s3, 256
      %v684 = vld [vmem:[%s683] sm:$0xff]
      %v685 = vld [vmem:[%s683 + $0x8] sm:$0xff]
      %v686 = vld [vmem:[%s683 + $0x10] sm:$0xff]
      %v687 = vld [vmem:[%s683 + $0x18] sm:$0xff]
      %v688 = vld [vmem:[%s683 + $0x20] sm:$0xff]
      %v689 = vld [vmem:[%s683 + $0x28] sm:$0xff]
      %v690 = vld [vmem:[%s683 + $0x30] sm:$0xff]
      %v691 = vld [vmem:[%s683 + $0x38] sm:$0xff]
      %v692 = vmul.f32 %v675, %v684
      %v693 = vmul.f32 %v676, %v685
      %v694 = vmul.f32 %v677, %v686
      %v695 = vmul.f32 %v678, %v687
      %v696 = vmul.f32 %v679, %v688
      %v697 = vmul.f32 %v680, %v689
      %v698 = vmul.f32 %v681, %v690
      %v699 = vmul.f32 %v682, %v691
      %700 = vrot.lane.b32.xlu0 %v675, 17
      %v701 = vpop.permute.xlu0 %700
      %702 = vrot.lane.b32.xlu0 %v677, 17
      %v703 = vpop.permute.xlu0 %702
      %704 = vrot.lane.b32.xlu0 %v679, 17
      %v705 = vpop.permute.xlu0 %704
      %706 = vrot.lane.b32.xlu0 %v681, 17
      %v707 = vpop.permute.xlu0 %706
      %708 = vrot.lane.b32.xlu0 %v676, 17
      %v709 = vpop.permute.xlu0 %708
      %710 = vrot.lane.b32.xlu0 %v678, 17
      %v711 = vpop.permute.xlu0 %710
      %712 = vrot.lane.b32.xlu0 %v680, 17
      %v713 = vpop.permute.xlu0 %712
      %714 = vrot.lane.b32.xlu0 %v682, 17
      %v715 = vpop.permute.xlu0 %714
      %v716 = vlaneseq
      %v717 = vand.u32 %v716, 127
      %vm718 = vcmp.lt.s32.totalorder %v717, 17
      %v719 = vsel %vm718, %v701, %v709
      %v720 = vsel %vm718, %v703, %v711
      %v721 = vsel %vm718, %v705, %v713
      %v722 = vsel %vm718, %v707, %v715
      %v723 = vsel %vm718, %v709, %v701
      %v724 = vsel %vm718, %v711, %v703
      %v725 = vsel %vm718, %v713, %v705
      %v726 = vsel %vm718, %v715, %v707
      %v727 = vld [vmem:[%s3] sm:$0xff]
      %v728 = vld [vmem:[%s3 + $0x8] sm:$0xff]
      %v729 = vld [vmem:[%s3 + $0x10] sm:$0xff]
      %v730 = vld [vmem:[%s3 + $0x18] sm:$0xff]
      %v731 = vld [vmem:[%s3 + $0x20] sm:$0xff]
      %v732 = vld [vmem:[%s3 + $0x28] sm:$0xff]
      %v733 = vld [vmem:[%s3 + $0x30] sm:$0xff]
      %v734 = vld [vmem:[%s3 + $0x38] sm:$0xff]
      %v735 = vmul.f32 %v723, %v727
      %v736 = vmul.f32 %v719, %v728
      %v737 = vmul.f32 %v724, %v729
      %v738 = vmul.f32 %v720, %v730
      %v739 = vmul.f32 %v725, %v731
      %v740 = vmul.f32 %v721, %v732
      %v741 = vmul.f32 %v726, %v733
      %v742 = vmul.f32 %v722, %v734
      %v743 = vadd.f32 %v692, %v735
      %v744 = vadd.f32 %v693, %v736
      %v745 = vadd.f32 %v694, %v737
      %v746 = vadd.f32 %v695, %v738
      %v747 = vadd.f32 %v696, %v739
      %v748 = vadd.f32 %v697, %v740
      %v749 = vadd.f32 %v698, %v741
      %v750 = vadd.f32 %v699, %v742
      %751 = vrot.lane.b32.xlu0 %v675, 16
      %v752 = vpop.permute.xlu0 %751
      %753 = vrot.lane.b32.xlu0 %v677, 16
      %v754 = vpop.permute.xlu0 %753
      %755 = vrot.lane.b32.xlu0 %v679, 16
      %v756 = vpop.permute.xlu0 %755
      %757 = vrot.lane.b32.xlu0 %v681, 16
      %v758 = vpop.permute.xlu0 %757
      %759 = vrot.lane.b32.xlu0 %v676, 16
      %v760 = vpop.permute.xlu0 %759
      %761 = vrot.lane.b32.xlu0 %v678, 16
      %v762 = vpop.permute.xlu0 %761
      %763 = vrot.lane.b32.xlu0 %v680, 16
      %v764 = vpop.permute.xlu0 %763
      %765 = vrot.lane.b32.xlu0 %v682, 16
      %v766 = vpop.permute.xlu0 %765
      %vm767 = vcmp.lt.s32.totalorder %v717, 16
      %v768 = vsel %vm767, %v752, %v760
      %v769 = vsel %vm767, %v754, %v762
      %v770 = vsel %vm767, %v756, %v764
      %v771 = vsel %vm767, %v758, %v766
      %v772 = vsel %vm767, %v760, %v752
      %v773 = vsel %vm767, %v762, %v754
      %v774 = vsel %vm767, %v764, %v756
      %v775 = vsel %vm767, %v766, %v758
      %s776 = scalar_lea.vmem %s3, 64
      %v777 = vld [vmem:[%s776] sm:$0xff]
      %v778 = vld [vmem:[%s776 + $0x8] sm:$0xff]
      %v779 = vld [vmem:[%s776 + $0x10] sm:$0xff]
      %v780 = vld [vmem:[%s776 + $0x18] sm:$0xff]
      %v781 = vld [vmem:[%s776 + $0x20] sm:$0xff]
      %v782 = vld [vmem:[%s776 + $0x28] sm:$0xff]
      %v783 = vld [vmem:[%s776 + $0x30] sm:$0xff]
      %v784 = vld [vmem:[%s776 + $0x38] sm:$0xff]
      %v785 = vmul.f32 %v772, %v777
      %v786 = vmul.f32 %v768, %v778
      %v787 = vmul.f32 %v773, %v779
      %v788 = vmul.f32 %v769, %v780
      %v789 = vmul.f32 %v774, %v781
      %v790 = vmul.f32 %v770, %v782
      %v791 = vmul.f32 %v775, %v783
      %v792 = vmul.f32 %v771, %v784
      %v793 = vadd.f32 %v743, %v785
      %v794 = vadd.f32 %v744, %v786
      %v795 = vadd.f32 %v745, %v787
      %v796 = vadd.f32 %v746, %v788
      %v797 = vadd.f32 %v747, %v789
      %v798 = vadd.f32 %v748, %v790
      %v799 = vadd.f32 %v749, %v791
      %v800 = vadd.f32 %v750, %v792
      %801 = vrot.lane.b32.xlu0 %v675, 15
      %v802 = vpop.permute.xlu0 %801
      %803 = vrot.lane.b32.xlu0 %v677, 15
      %v804 = vpop.permute.xlu0 %803
      %805 = vrot.lane.b32.xlu0 %v679, 15
      %v806 = vpop.permute.xlu0 %805
      %807 = vrot.lane.b32.xlu0 %v681, 15
      %v808 = vpop.permute.xlu0 %807
      %809 = vrot.lane.b32.xlu0 %v676, 15
      %v810 = vpop.permute.xlu0 %809
      %811 = vrot.lane.b32.xlu0 %v678, 15
      %v812 = vpop.permute.xlu0 %811
      %813 = vrot.lane.b32.xlu0 %v680, 15
      %v814 = vpop.permute.xlu0 %813
      %815 = vrot.lane.b32.xlu0 %v682, 15
      %v816 = vpop.permute.xlu0 %815
      %vm817 = vcmp.lt.s32.totalorder %v717, 15
      %v818 = vsel %vm817, %v802, %v810
      %v819 = vsel %vm817, %v804, %v812
      %v820 = vsel %vm817, %v806, %v814
      %v821 = vsel %vm817, %v808, %v816
      %v822 = vsel %vm817, %v810, %v802
      %v823 = vsel %vm817, %v812, %v804
      %v824 = vsel %vm817, %v814, %v806
      %v825 = vsel %vm817, %v816, %v808
      %s826 = scalar_lea.vmem %s3, 128
      %v827 = vld [vmem:[%s826] sm:$0xff]
      %v828 = vld [vmem:[%s826 + $0x8] sm:$0xff]
      %v829 = vld [vmem:[%s826 + $0x10] sm:$0xff]
      %v830 = vld [vmem:[%s826 + $0x18] sm:$0xff]
      %v831 = vld [vmem:[%s826 + $0x20] sm:$0xff]
      %v832 = vld [vmem:[%s826 + $0x28] sm:$0xff]
      %v833 = vld [vmem:[%s826 + $0x30] sm:$0xff]
      %v834 = vld [vmem:[%s826 + $0x38] sm:$0xff]
      %v835 = vmul.f32 %v822, %v827
      %v836 = vmul.f32 %v818, %v828
      %v837 = vmul.f32 %v823, %v829
      %v838 = vmul.f32 %v819, %v830
      %v839 = vmul.f32 %v824, %v831
      %v840 = vmul.f32 %v820, %v832
      %v841 = vmul.f32 %v825, %v833
      %v842 = vmul.f32 %v821, %v834
      %v843 = vadd.f32 %v793, %v835
      %v844 = vadd.f32 %v794, %v836
      %v845 = vadd.f32 %v795, %v837
      %v846 = vadd.f32 %v796, %v838
      %v847 = vadd.f32 %v797, %v839
      %v848 = vadd.f32 %v798, %v840
      %v849 = vadd.f32 %v799, %v841
      %v850 = vadd.f32 %v800, %v842
      %851 = vrot.lane.b32.xlu0 %v675, 1
      %v852 = vpop.permute.xlu0 %851
      %853 = vrot.lane.b32.xlu0 %v677, 1
      %v854 = vpop.permute.xlu0 %853
      %855 = vrot.lane.b32.xlu0 %v679, 1
      %v856 = vpop.permute.xlu0 %855
      %857 = vrot.lane.b32.xlu0 %v681, 1
      %v858 = vpop.permute.xlu0 %857
      %859 = vrot.lane.b32.xlu0 %v676, 1
      %v860 = vpop.permute.xlu0 %859
      %861 = vrot.lane.b32.xlu0 %v678, 1
      %v862 = vpop.permute.xlu0 %861
      %863 = vrot.lane.b32.xlu0 %v680, 1
      %v864 = vpop.permute.xlu0 %863
      %865 = vrot.lane.b32.xlu0 %v682, 1
      %v866 = vpop.permute.xlu0 %865
      %vm867 = vcmp.lt.s32.totalorder %v717, 1
      %v868 = vsel %vm867, %v852, %v860
      %v869 = vsel %vm867, %v854, %v862
      %v870 = vsel %vm867, %v856, %v864
      %v871 = vsel %vm867, %v858, %v866
      %v872 = vsel %vm867, %v860, %v852
      %v873 = vsel %vm867, %v862, %v854
      %v874 = vsel %vm867, %v864, %v856
      %v875 = vsel %vm867, %v866, %v858
      %s876 = scalar_lea.vmem %s3, 192
      %v877 = vld [vmem:[%s876] sm:$0xff]
      %v878 = vld [vmem:[%s876 + $0x8] sm:$0xff]
      %v879 = vld [vmem:[%s876 + $0x10] sm:$0xff]
      %v880 = vld [vmem:[%s876 + $0x18] sm:$0xff]
      %v881 = vld [vmem:[%s876 + $0x20] sm:$0xff]
      %v882 = vld [vmem:[%s876 + $0x28] sm:$0xff]
      %v883 = vld [vmem:[%s876 + $0x30] sm:$0xff]
      %v884 = vld [vmem:[%s876 + $0x38] sm:$0xff]
      %v885 = vmul.f32 %v872, %v877
      %v886 = vmul.f32 %v868, %v878
      %v887 = vmul.f32 %v873, %v879
      %v888 = vmul.f32 %v869, %v880
      %v889 = vmul.f32 %v874, %v881
      %v890 = vmul.f32 %v870, %v882
      %v891 = vmul.f32 %v875, %v883
      %v892 = vmul.f32 %v871, %v884
      %v893 = vadd.f32 %v843, %v885
      %v894 = vadd.f32 %v844, %v886
      %v895 = vadd.f32 %v845, %v887
      %v896 = vadd.f32 %v846, %v888
      %v897 = vadd.f32 %v847, %v889
      %v898 = vadd.f32 %v848, %v890
      %v899 = vadd.f32 %v849, %v891
      %v900 = vadd.f32 %v850, %v892
      %901 = vrot.lane.b32.xlu0 %v675, 127
      %v902 = vpop.permute.xlu0 %901
      %903 = vrot.lane.b32.xlu0 %v677, 127
      %v904 = vpop.permute.xlu0 %903
      %905 = vrot.lane.b32.xlu0 %v679, 127
      %v906 = vpop.permute.xlu0 %905
      %907 = vrot.lane.b32.xlu0 %v681, 127
      %v908 = vpop.permute.xlu0 %907
      %909 = vrot.lane.b32.xlu0 %v676, 127
      %v910 = vpop.permute.xlu0 %909
      %911 = vrot.lane.b32.xlu0 %v678, 127
      %v912 = vpop.permute.xlu0 %911
      %913 = vrot.lane.b32.xlu0 %v680, 127
      %v914 = vpop.permute.xlu0 %913
      %915 = vrot.lane.b32.xlu0 %v682, 127
      %v916 = vpop.permute.xlu0 %915
      %vm917 = vcmp.lt.s32.totalorder %v717, 127
      %v918 = vsel %vm917, %v902, %v910
      %v919 = vsel %vm917, %v904, %v912
      %v920 = vsel %vm917, %v906, %v914
      %v921 = vsel %vm917, %v908, %v916
      %v922 = vsel %vm917, %v910, %v902
      %v923 = vsel %vm917, %v912, %v904
      %v924 = vsel %vm917, %v914, %v906
      %v925 = vsel %vm917, %v916, %v908
      %s926 = scalar_lea.vmem %s3, 320
      %v927 = vld [vmem:[%s926] sm:$0xff]
      %v928 = vld [vmem:[%s926 + $0x8] sm:$0xff]
      %v929 = vld [vmem:[%s926 + $0x10] sm:$0xff]
      %v930 = vld [vmem:[%s926 + $0x18] sm:$0xff]
      %v931 = vld [vmem:[%s926 + $0x20] sm:$0xff]
      %v932 = vld [vmem:[%s926 + $0x28] sm:$0xff]
      %v933 = vld [vmem:[%s926 + $0x30] sm:$0xff]
      %v934 = vld [vmem:[%s926 + $0x38] sm:$0xff]
      %v935 = vmul.f32 %v918, %v927
      %v936 = vmul.f32 %v922, %v928
      %v937 = vmul.f32 %v919, %v929
      %v938 = vmul.f32 %v923, %v930
      %v939 = vmul.f32 %v920, %v931
      %v940 = vmul.f32 %v924, %v932
      %v941 = vmul.f32 %v921, %v933
      %v942 = vmul.f32 %v925, %v934
      %v943 = vadd.f32 %v893, %v935
      %v944 = vadd.f32 %v894, %v936
      %v945 = vadd.f32 %v895, %v937
      %v946 = vadd.f32 %v896, %v938
      %v947 = vadd.f32 %v897, %v939
      %v948 = vadd.f32 %v898, %v940
      %v949 = vadd.f32 %v899, %v941
      %v950 = vadd.f32 %v900, %v942
      %951 = vrot.lane.b32.xlu0 %v675, 113
      %v952 = vpop.permute.xlu0 %951
      %953 = vrot.lane.b32.xlu0 %v677, 113
      %v954 = vpop.permute.xlu0 %953
      %955 = vrot.lane.b32.xlu0 %v679, 113
      %v956 = vpop.permute.xlu0 %955
      %957 = vrot.lane.b32.xlu0 %v681, 113
      %v958 = vpop.permute.xlu0 %957
      %959 = vrot.lane.b32.xlu0 %v676, 113
      %v960 = vpop.permute.xlu0 %959
      %961 = vrot.lane.b32.xlu0 %v678, 113
      %v962 = vpop.permute.xlu0 %961
      %963 = vrot.lane.b32.xlu0 %v680, 113
      %v964 = vpop.permute.xlu0 %963
      %965 = vrot.lane.b32.xlu0 %v682, 113
      %v966 = vpop.permute.xlu0 %965
      %vm967 = vcmp.lt.s32.totalorder %v717, 113
      %v968 = vsel %vm967, %v952, %v960
      %v969 = vsel %vm967, %v954, %v962
      %v970 = vsel %vm967, %v956, %v964
      %v971 = vsel %vm967, %v958, %v966
      %v972 = vsel %vm967, %v960, %v952
      %v973 = vsel %vm967, %v962, %v954
      %v974 = vsel %vm967, %v964, %v956
      %v975 = vsel %vm967, %v966, %v958
      %s976 = scalar_lea.vmem %s3, 384
      %v977 = vld [vmem:[%s976] sm:$0xff]
      %v978 = vld [vmem:[%s976 + $0x8] sm:$0xff]
      %v979 = vld [vmem:[%s976 + $0x10] sm:$0xff]
      %v980 = vld [vmem:[%s976 + $0x18] sm:$0xff]
      %v981 = vld [vmem:[%s976 + $0x20] sm:$0xff]
      %v982 = vld [vmem:[%s976 + $0x28] sm:$0xff]
      %v983 = vld [vmem:[%s976 + $0x30] sm:$0xff]
      %v984 = vld [vmem:[%s976 + $0x38] sm:$0xff]
      %v985 = vmul.f32 %v968, %v977
      %v986 = vmul.f32 %v972, %v978
      %v987 = vmul.f32 %v969, %v979
      %v988 = vmul.f32 %v973, %v980
      %v989 = vmul.f32 %v970, %v981
      %v990 = vmul.f32 %v974, %v982
      %v991 = vmul.f32 %v971, %v983
      %v992 = vmul.f32 %v975, %v984
      %v993 = vadd.f32 %v943, %v985
      %v994 = vadd.f32 %v944, %v986
      %v995 = vadd.f32 %v945, %v987
      %v996 = vadd.f32 %v946, %v988
      %v997 = vadd.f32 %v947, %v989
      %v998 = vadd.f32 %v948, %v990
      %v999 = vadd.f32 %v949, %v991
      %v1000 = vadd.f32 %v950, %v992
      %1001 = vrot.lane.b32.xlu0 %v675, 112
      %v1002 = vpop.permute.xlu0 %1001
      %1003 = vrot.lane.b32.xlu0 %v677, 112
      %v1004 = vpop.permute.xlu0 %1003
      %1005 = vrot.lane.b32.xlu0 %v679, 112
      %v1006 = vpop.permute.xlu0 %1005
      %1007 = vrot.lane.b32.xlu0 %v681, 112
      %v1008 = vpop.permute.xlu0 %1007
      %1009 = vrot.lane.b32.xlu0 %v676, 112
      %v1010 = vpop.permute.xlu0 %1009
      %1011 = vrot.lane.b32.xlu0 %v678, 112
      %v1012 = vpop.permute.xlu0 %1011
      %1013 = vrot.lane.b32.xlu0 %v680, 112
      %v1014 = vpop.permute.xlu0 %1013
      %1015 = vrot.lane.b32.xlu0 %v682, 112
      %v1016 = vpop.permute.xlu0 %1015
      %vm1017 = vcmp.lt.s32.totalorder %v717, 112
      %v1018 = vsel %vm1017, %v1002, %v1010
      %v1019 = vsel %vm1017, %v1004, %v1012
      %v1020 = vsel %vm1017, %v1006, %v1014
      %v1021 = vsel %vm1017, %v1008, %v1016
      %v1022 = vsel %vm1017, %v1010, %v1002
      %v1023 = vsel %vm1017, %v1012, %v1004
      %v1024 = vsel %vm1017, %v1014, %v1006
      %v1025 = vsel %vm1017, %v1016, %v1008
      %s1026 = scalar_lea.vmem %s3, 448
      %v1027 = vld [vmem:[%s1026] sm:$0xff]
      %v1028 = vld [vmem:[%s1026 + $0x8] sm:$0xff]
      %v1029 = vld [vmem:[%s1026 + $0x10] sm:$0xff]
      %v1030 = vld [vmem:[%s1026 + $0x18] sm:$0xff]
      %v1031 = vld [vmem:[%s1026 + $0x20] sm:$0xff]
      %v1032 = vld [vmem:[%s1026 + $0x28] sm:$0xff]
      %v1033 = vld [vmem:[%s1026 + $0x30] sm:$0xff]
      %v1034 = vld [vmem:[%s1026 + $0x38] sm:$0xff]
      %v1035 = vmul.f32 %v1018, %v1027
      %v1036 = vmul.f32 %v1022, %v1028
      %v1037 = vmul.f32 %v1019, %v1029
      %v1038 = vmul.f32 %v1023, %v1030
      %v1039 = vmul.f32 %v1020, %v1031
      %v1040 = vmul.f32 %v1024, %v1032
      %v1041 = vmul.f32 %v1021, %v1033
      %v1042 = vmul.f32 %v1025, %v1034
      %v1043 = vadd.f32 %v993, %v1035
      %v1044 = vadd.f32 %v994, %v1036
      %v1045 = vadd.f32 %v995, %v1037
      %v1046 = vadd.f32 %v996, %v1038
      %v1047 = vadd.f32 %v997, %v1039
      %v1048 = vadd.f32 %v998, %v1040
      %v1049 = vadd.f32 %v999, %v1041
      %v1050 = vadd.f32 %v1000, %v1042
      %1051 = vrot.lane.b32.xlu0 %v675, 111
      %v1052 = vpop.permute.xlu0 %1051
      %1053 = vrot.lane.b32.xlu0 %v677, 111
      %v1054 = vpop.permute.xlu0 %1053
      %1055 = vrot.lane.b32.xlu0 %v679, 111
      %v1056 = vpop.permute.xlu0 %1055
      %1057 = vrot.lane.b32.xlu0 %v681, 111
      %v1058 = vpop.permute.xlu0 %1057
      %1059 = vrot.lane.b32.xlu0 %v676, 111
      %v1060 = vpop.permute.xlu0 %1059
      %1061 = vrot.lane.b32.xlu0 %v678, 111
      %v1062 = vpop.permute.xlu0 %1061
      %1063 = vrot.lane.b32.xlu0 %v680, 111
      %v1064 = vpop.permute.xlu0 %1063
      %1065 = vrot.lane.b32.xlu0 %v682, 111
      %v1066 = vpop.permute.xlu0 %1065
      %vm1067 = vcmp.lt.s32.totalorder %v717, 111
      %v1068 = vsel %vm1067, %v1052, %v1060
      %v1069 = vsel %vm1067, %v1054, %v1062
      %v1070 = vsel %vm1067, %v1056, %v1064
      %v1071 = vsel %vm1067, %v1058, %v1066
      %v1072 = vsel %vm1067, %v1060, %v1052
      %v1073 = vsel %vm1067, %v1062, %v1054
      %v1074 = vsel %vm1067, %v1064, %v1056
      %v1075 = vsel %vm1067, %v1066, %v1058
      %s1076 = scalar_lea.vmem %s3, 512
      %v1077 = vld [vmem:[%s1076] sm:$0xff]
      %v1078 = vld [vmem:[%s1076 + $0x8] sm:$0xff]
      %v1079 = vld [vmem:[%s1076 + $0x10] sm:$0xff]
      %v1080 = vld [vmem:[%s1076 + $0x18] sm:$0xff]
      %v1081 = vld [vmem:[%s1076 + $0x20] sm:$0xff]
      %v1082 = vld [vmem:[%s1076 + $0x28] sm:$0xff]
      %v1083 = vld [vmem:[%s1076 + $0x30] sm:$0xff]
      %v1084 = vld [vmem:[%s1076 + $0x38] sm:$0xff]
      %v1085 = vmul.f32 %v1068, %v1077
      %v1086 = vmul.f32 %v1072, %v1078
      %v1087 = vmul.f32 %v1069, %v1079
      %v1088 = vmul.f32 %v1073, %v1080
      %v1089 = vmul.f32 %v1070, %v1081
      %v1090 = vmul.f32 %v1074, %v1082
      %v1091 = vmul.f32 %v1071, %v1083
      %v1092 = vmul.f32 %v1075, %v1084
      %v1093 = vadd.f32 %v1043, %v1085
      %v1094 = vadd.f32 %v1044, %v1086
      %v1095 = vadd.f32 %v1045, %v1087
      %v1096 = vadd.f32 %v1046, %v1088
      %v1097 = vadd.f32 %v1047, %v1089
      %v1098 = vadd.f32 %v1048, %v1090
      %v1099 = vadd.f32 %v1049, %v1091
      %v1100 = vadd.f32 %v1050, %v1092
      %1102 = vset.pattern.permute.xlu0 0
      %1103 = vperm.xlu0 %1102, %v597
      %v1104 = vpop.permute.xlu0 %1103
      %1107 = vset.pattern.permute.xlu0 0
      %1108 = vperm.xlu0 %1107, %v598
      %v1109 = vpop.permute.xlu0 %1108
      %vm1111 = vcmask 261120
      %v1113 = vsel %vm1111, %v595, 0
      %v1116 = vsel %vm1111, %v596, 0
      %1118 = vmatprep.subr.mxu0 %v1094
      %1119 = vmatpush1.msra.mxu0 %v1093
      %1120 = vmatprep.subr.mxu0 %v1096
      %1121 = vmatpush1.msra.mxu0 %v1095
      %1122 = vmatprep.subr.mxu0 %v1098
      %1123 = vmatpush1.msra.mxu0 %v1097
      %1124 = vmatprep.subr.mxu0 %v1100
      %1125 = vmatpush1.msra.mxu0 %v1099
      %1126 = vmatprep.subr.mxu0 0.0
      %1127 = vmatpush1.msra.mxu0 0.0
      %1128 = vmatprep.subr.mxu0 0.0
      %1129 = vmatpush1.msra.mxu0 0.0
      %1130 = vmatprep.subr.mxu0 0.0
      %1131 = vmatpush1.msra.mxu0 0.0
      %1132 = vmatprep.subr.mxu0 0.0
      %1133 = vmatpush1.msra.mxu0 0.0
      %1134 = vmatprep.subr.mxu0 0.0
      %1135 = vmatpush1.msra.mxu0 0.0
      %1136 = vmatprep.subr.mxu0 0.0
      %1137 = vmatpush1.msra.mxu0 0.0
      %1138 = vmatprep.subr.mxu0 0.0
      %1139 = vmatpush1.msra.mxu0 0.0
      %1140 = vmatprep.subr.mxu0 0.0
      %1141 = vmatpush1.msra.mxu0 0.0
      %1142 = vmatprep.subr.mxu0 0.0
      %1143 = vmatpush1.msra.mxu0 0.0
      %1144 = vmatprep.subr.mxu0 0.0
      %1145 = vmatpush1.msra.mxu0 0.0
      %1146 = vmatprep.subr.mxu0 0.0
      %1147 = vmatpush1.msra.mxu0 0.0
      %1148 = vmatprep.subr.mxu0 0.0
      %1149 = vmatpush1.msra.mxu0 0.0
      %1150 = vmatprep.subr.mxu0 0.0
      %1151 = vmatpush1.msra.mxu0 0.0
      %1152 = vmatprep.subr.mxu0 0.0
      %1153 = vmatpush1.msra.mxu0 0.0
      %1154 = vmatprep.subr.mxu0 0.0
      %1155 = vmatpush1.msra.mxu0 0.0
      %1156 = vmatprep.subr.mxu0 0.0
      %1157 = vmatpush1.msra.mxu0 0.0
      %1158 = vmatprep.subr.mxu0 0.0
      %1159 = vmatpush1.msra.mxu0 0.0
      %1160 = vmatprep.subr.mxu0 0.0
      %1161 = vmatpush1.msra.mxu0 0.0
      %1162 = vmatprep.subr.mxu0 0.0
      %1163 = vmatpush1.msra.mxu0 0.0
      %1164 = vmatprep.subr.mxu0 0.0
      %1165 = vmatpush1.msra.mxu0 0.0
      %1166 = vmatprep.subr.mxu0 0.0
      %1167 = vmatpush1.msra.mxu0 0.0
      %1168 = vmatprep.subr.mxu0 0.0
      %1169 = vmatpush1.msra.mxu0 0.0
      %1170 = vmatprep.subr.mxu0 0.0
      %1171 = vmatpush1.msra.mxu0 0.0
      %1172 = vmatprep.subr.mxu0 0.0
      %1173 = vmatpush1.msra.mxu0 0.0
      %1174 = vmatprep.subr.mxu0 0.0
      %1175 = vmatpush1.msra.mxu0 0.0
      %1176 = vmatprep.subr.mxu0 0.0
      %1177 = vmatpush1.msra.mxu0 0.0
      %1178 = vmatprep.subr.mxu0 0.0
      %1179 = vmatpush1.msra.mxu0 0.0
      %1180 = vmatprep.subr.mxu0 0.0
      %1181 = vmatpush1.msra.mxu0 0.0
      %1182 = vmatprep.mubr.f32.mxu0 0.0
      %1183 = vmatmul.mubr.f32.gmra.mrb[0].mxu0 %v1113
      %v1184 = vpop.f32.mrb[0].mxu0
      %v1185 = vadd.f32 %v1104, %v1184
      %v1186 = vpop.f32.mrb[0].mxu0
      %v1187 = vadd.f32 %v1104, %v1186
      %1188 = vmatprep.mubr.f32.mxu0 0.0
      %1189 = vmatmul.mubr.f32.gmra.mrb[0].mxu0 %v1116
      %v1190 = vpop.f32.mrb[0].mxu0
      %v1191 = vadd.f32 %v1109, %v1190
      %v1192 = vpop.f32.mrb[0].mxu0
      %v1193 = vadd.f32 %v1109, %v1192
      %1194 = vdwg.mxu0
      %v1195 = vadd.f32 %v1185, %v585
      %v1196 = vadd.f32 %v1187, %v587
      %v1197 = vadd.f32 %v1191, %v591
      %v1198 = vadd.f32 %v1193, %v593
      %v1199 = vld [vmem:[%s4 + $0x80] sm:$0xff]
      %v1200 = vld [vmem:[%s4 + $0x88] sm:$0xff]
      %v1201 = vld [vmem:[%s4 + $0x90] sm:$0xff]
      %v1202 = vld [vmem:[%s4 + $0x98] sm:$0xff]
      %vm1203 = vcmask 72704
      %v1205 = vsel %vm1203, %v1199, 0
      %v1208 = vsel %vm1203, %v1200, 0
      %v1211 = vsel %vm1203, %v1201, 0
      %v1214 = vsel %vm1203, %v1202, 0
      %vm1216 = vcmask 1040384
      %v1218 = vsel %vm1216, %v1197, 0
      %v1221 = vsel %vm1216, %v1198, 0
      %1223 = vmatprep.subr.mxu0 %v1196
      %1224 = vmatpush1.msra.mxu0 %v1195
      %1225 = vmatprep.subr.mxu0 %v1221
      %1226 = vmatpush1.msra.mxu0 %v1218
      %1227 = vmatprep.subr.mxu0 0.0
      %1228 = vmatpush1.msra.mxu0 0.0
      %1229 = vmatprep.subr.mxu0 0.0
      %1230 = vmatpush1.msra.mxu0 0.0
      %1231 = vmatprep.subr.mxu0 0.0
      %1232 = vmatpush1.msra.mxu0 0.0
      %1233 = vmatprep.subr.mxu0 0.0
      %1234 = vmatpush1.msra.mxu0 0.0
      %1235 = vmatprep.subr.mxu0 0.0
      %1236 = vmatpush1.msra.mxu0 0.0
      %1237 = vmatprep.subr.mxu0 0.0
      %1238 = vmatpush1.msra.mxu0 0.0
      %1239 = vmatprep.subr.mxu0 0.0
      %1240 = vmatpush1.msra.mxu0 0.0
      %1241 = vmatprep.subr.mxu0 0.0
      %1242 = vmatpush1.msra.mxu0 0.0
      %1243 = vmatprep.subr.mxu0 0.0
      %1244 = vmatpush1.msra.mxu0 0.0
      %1245 = vmatprep.subr.mxu0 0.0
      %1246 = vmatpush1.msra.mxu0 0.0
      %1247 = vmatprep.subr.mxu0 0.0
      %1248 = vmatpush1.msra.mxu0 0.0
      %1249 = vmatprep.subr.mxu0 0.0
      %1250 = vmatpush1.msra.mxu0 0.0
      %1251 = vmatprep.subr.mxu0 0.0
      %1252 = vmatpush1.msra.mxu0 0.0
      %1253 = vmatprep.subr.mxu0 0.0
      %1254 = vmatpush1.msra.mxu0 0.0
      %1255 = vmatprep.subr.mxu0 0.0
      %1256 = vmatpush1.msra.mxu0 0.0
      %1257 = vmatprep.subr.mxu0 0.0
      %1258 = vmatpush1.msra.mxu0 0.0
      %1259 = vmatprep.subr.mxu0 0.0
      %1260 = vmatpush1.msra.mxu0 0.0
      %1261 = vmatprep.subr.mxu0 0.0
      %1262 = vmatpush1.msra.mxu0 0.0
      %1263 = vmatprep.subr.mxu0 0.0
      %1264 = vmatpush1.msra.mxu0 0.0
      %1265 = vmatprep.subr.mxu0 0.0
      %1266 = vmatpush1.msra.mxu0 0.0
      %1267 = vmatprep.subr.mxu0 0.0
      %1268 = vmatpush1.msra.mxu0 0.0
      %1269 = vmatprep.subr.mxu0 0.0
      %1270 = vmatpush1.msra.mxu0 0.0
      %1271 = vmatprep.subr.mxu0 0.0
      %1272 = vmatpush1.msra.mxu0 0.0
      %1273 = vmatprep.subr.mxu0 0.0
      %1274 = vmatpush1.msra.mxu0 0.0
      %1275 = vmatprep.subr.mxu0 0.0
      %1276 = vmatpush1.msra.mxu0 0.0
      %1277 = vmatprep.subr.mxu0 0.0
      %1278 = vmatpush1.msra.mxu0 0.0
      %1279 = vmatprep.subr.mxu0 0.0
      %1280 = vmatpush1.msra.mxu0 0.0
      %1281 = vmatprep.subr.mxu0 0.0
      %1282 = vmatpush1.msra.mxu0 0.0
      %1283 = vmatprep.subr.mxu0 0.0
      %1284 = vmatpush1.msra.mxu0 0.0
      %1285 = vmatprep.subr.mxu0 0.0
      %1286 = vmatpush1.msra.mxu0 0.0
      %1287 = vmatprep.mubr.f32.mxu0 0.0
      %1288 = vmatmul.mubr.f32.gmra.mrb[0].mxu0 %v1205
      %v1289 = vpop.f32.mrb[0].mxu0
      %v1290 = vadd.f32 0.0, %v1289
      %v1291 = vpop.f32.mrb[0].mxu0
      %v1292 = vadd.f32 0.0, %v1291
      %1293 = vmatprep.mubr.f32.mxu0 0.0
      %1294 = vmatmul.mubr.f32.gmra.mrb[0].mxu0 %v1208
      %v1295 = vpop.f32.mrb[0].mxu0
      %v1296 = vadd.f32 0.0, %v1295
      %v1297 = vpop.f32.mrb[0].mxu0
      %v1298 = vadd.f32 0.0, %v1297
      %1299 = vmatprep.mubr.f32.mxu0 0.0
      %1300 = vmatmul.mubr.f32.gmra.mrb[0].mxu0 %v1211
      %v1301 = vpop.f32.mrb[0].mxu0
      %v1302 = vadd.f32 0.0, %v1301
      %v1303 = vpop.f32.mrb[0].mxu0
      %v1304 = vadd.f32 0.0, %v1303
      %1305 = vmatprep.mubr.f32.mxu0 0.0
      %1306 = vmatmul.mubr.f32.gmra.mrb[0].mxu0 %v1214
      %v1307 = vpop.f32.mrb[0].mxu0
      %v1308 = vadd.f32 0.0, %v1307
      %v1309 = vpop.f32.mrb[0].mxu0
      %v1310 = vadd.f32 0.0, %v1309
      %1311 = vdwg.mxu0
      %v1312 = vld [vmem:[%s4 + $0xa0] sm:$0xff]
      %v1313 = vld [vmem:[%s4 + $0xa8] sm:$0xff]
      %v1314 = vadd.f32 %v1290, %v1292
      %1315 = vadd.xlane.f32.xlu0 %v1314
      %v1316 = vpop.xlane.xlu0 %1315
      %v1317 = vadd.f32 %v1296, %v1298
      %1318 = vadd.xlane.f32.xlu0 %v1317
      %v1319 = vpop.xlane.xlu0 %1318
      %v1320 = vadd.f32 %v1302, %v1304
      %1321 = vadd.xlane.f32.xlu0 %v1320
      %v1322 = vpop.xlane.xlu0 %1321
      %v1323 = vadd.f32 %v1308, %v1310
      %1324 = vadd.xlane.f32.xlu0 %v1323
      %v1325 = vpop.xlane.xlu0 %1324
      %v1326 = vmul.f32 %v1316, 0.00390625
      %v1327 = vmul.f32 %v1319, 0.00390625
      %v1328 = vmul.f32 %v1322, 0.00390625
      %v1329 = vmul.f32 %v1325, 0.00390625
      %v1330 = vmul.f32 %v1290, %v1290
      %v1331 = vmul.f32 %v1292, %v1292
      %v1332 = vmul.f32 %v1296, %v1296
      %v1333 = vmul.f32 %v1298, %v1298
      %v1334 = vmul.f32 %v1302, %v1302
      %v1335 = vmul.f32 %v1304, %v1304
      %v1336 = vmul.f32 %v1308, %v1308
      %v1337 = vmul.f32 %v1310, %v1310
      %v1338 = vadd.f32 %v1330, %v1331
      %1339 = vadd.xlane.f32.xlu0 %v1338
      %v1340 = vpop.xlane.xlu0 %1339
      %v1341 = vadd.f32 %v1332, %v1333
      %1342 = vadd.xlane.f32.xlu0 %v1341
      %v1343 = vpop.xlane.xlu0 %1342
      %v1344 = vadd.f32 %v1334, %v1335
      %1345 = vadd.xlane.f32.xlu0 %v1344
      %v1346 = vpop.xlane.xlu0 %1345
      %v1347 = vadd.f32 %v1336, %v1337
      %1348 = vadd.xlane.f32.xlu0 %v1347
      %v1349 = vpop.xlane.xlu0 %1348
      %v1350 = vmul.f32 %v1340, 0.00390625
      %v1351 = vmul.f32 %v1343, 0.00390625
      %v1352 = vmul.f32 %v1346, 0.00390625
      %v1353 = vmul.f32 %v1349, 0.00390625
      %v1354 = vmul.f32 %v1326, %v1326
      %v1355 = vmul.f32 %v1327, %v1327
      %v1356 = vmul.f32 %v1328, %v1328
      %v1357 = vmul.f32 %v1329, %v1329
      %v1358 = vsub.f32 %v1350, %v1354
      %v1359 = vsub.f32 %v1351, %v1355
      %v1360 = vsub.f32 %v1352, %v1356
      %v1361 = vsub.f32 %v1353, %v1357
      %v1362 = vmax.f32 %v1358, 0.0
      %v1363 = vmax.f32 %v1359, 0.0
      %v1364 = vmax.f32 %v1360, 0.0
      %v1365 = vmax.f32 %v1361, 0.0
      %v1366 = vsub.f32 %v1290, %v1326
      %v1367 = vsub.f32 %v1292, %v1326
      %v1368 = vsub.f32 %v1296, %v1327
      %v1369 = vsub.f32 %v1298, %v1327
      %v1370 = vsub.f32 %v1302, %v1328
      %v1371 = vsub.f32 %v1304, %v1328
      %v1372 = vsub.f32 %v1308, %v1329
      %v1373 = vsub.f32 %v1310, %v1329
      %v1374 = vadd.f32 %v1362, 1e-05
      %v1375 = vadd.f32 %v1363, 1e-05
      %v1376 = vadd.f32 %v1364, 1e-05
      %v1377 = vadd.f32 %v1365, 1e-05
      %v1378 = vrsqrt.pop %v1374
      %v1379 = vrsqrt.pop %v1375
      %v1380 = vrsqrt.pop %v1376
      %v1381 = vrsqrt.pop %v1377
      %v1382 = vmul.f32 %v1366, %v1378
      %v1383 = vmul.f32 %v1367, %v1378
      %v1384 = vmul.f32 %v1368, %v1379
      %v1385 = vmul.f32 %v1369, %v1379
      %v1386 = vmul.f32 %v1370, %v1380
      %v1387 = vmul.f32 %v1371, %v1380
      %v1388 = vmul.f32 %v1372, %v1381
      %v1389 = vmul.f32 %v1373, %v1381
      %v1390 = vmax.f32 %v1382, 0.0
      %v1391 = vmax.f32 %v1383, 0.0
      %v1392 = vmax.f32 %v1384, 0.0
      %v1393 = vmax.f32 %v1385, 0.0
      %v1394 = vmax.f32 %v1386, 0.0
      %v1395 = vmax.f32 %v1387, 0.0
      %v1396 = vmax.f32 %v1388, 0.0
      %v1397 = vmax.f32 %v1389, 0.0
      %s1398 = scalar_lea.vmem %s3, 832
      %v1399 = vld [vmem:[%s1398] sm:$0xff]
      %v1400 = vld [vmem:[%s1398 + $0x8] sm:$0xff]
      %v1401 = vld [vmem:[%s1398 + $0x10] sm:$0xff]
      %v1402 = vld [vmem:[%s1398 + $0x18] sm:$0xff]
      %v1403 = vld [vmem:[%s1398 + $0x20] sm:$0xff]
      %v1404 = vld [vmem:[%s1398 + $0x28] sm:$0xff]
      %v1405 = vld [vmem:[%s1398 + $0x30] sm:$0xff]
      %v1406 = vld [vmem:[%s1398 + $0x38] sm:$0xff]
      %v1407 = vmul.f32 %v1390, %v1399
      %v1408 = vmul.f32 %v1391, %v1400
      %v1409 = vmul.f32 %v1392, %v1401
      %v1410 = vmul.f32 %v1393, %v1402
      %v1411 = vmul.f32 %v1394, %v1403
      %v1412 = vmul.f32 %v1395, %v1404
      %v1413 = vmul.f32 %v1396, %v1405
      %v1414 = vmul.f32 %v1397, %v1406
      %1415 = vrot.lane.b32.xlu0 %v1390, 17
      %v1416 = vpop.permute.xlu0 %1415
      %1417 = vrot.lane.b32.xlu0 %v1392, 17
      %v1418 = vpop.permute.xlu0 %1417
      %1419 = vrot.lane.b32.xlu0 %v1394, 17
      %v1420 = vpop.permute.xlu0 %1419
      %1421 = vrot.lane.b32.xlu0 %v1396, 17
      %v1422 = vpop.permute.xlu0 %1421
      %1423 = vrot.lane.b32.xlu0 %v1391, 17
      %v1424 = vpop.permute.xlu0 %1423
      %1425 = vrot.lane.b32.xlu0 %v1393, 17
      %v1426 = vpop.permute.xlu0 %1425
      %1427 = vrot.lane.b32.xlu0 %v1395, 17
      %v1428 = vpop.permute.xlu0 %1427
      %1429 = vrot.lane.b32.xlu0 %v1397, 17
      %v1430 = vpop.permute.xlu0 %1429
      %v1431 = vsel %vm718, %v1416, %v1424
      %v1432 = vsel %vm718, %v1418, %v1426
      %v1433 = vsel %vm718, %v1420, %v1428
      %v1434 = vsel %vm718, %v1422, %v1430
      %v1435 = vsel %vm718, %v1424, %v1416
      %v1436 = vsel %vm718, %v1426, %v1418
      %v1437 = vsel %vm718, %v1428, %v1420
      %v1438 = vsel %vm718, %v1430, %v1422
      %s1439 = scalar_lea.vmem %s3, 576
      %v1440 = vld [vmem:[%s1439] sm:$0xff]
      %v1441 = vld [vmem:[%s1439 + $0x8] sm:$0xff]
      %v1442 = vld [vmem:[%s1439 + $0x10] sm:$0xff]
      %v1443 = vld [vmem:[%s1439 + $0x18] sm:$0xff]
      %v1444 = vld [vmem:[%s1439 + $0x20] sm:$0xff]
      %v1445 = vld [vmem:[%s1439 + $0x28] sm:$0xff]
      %v1446 = vld [vmem:[%s1439 + $0x30] sm:$0xff]
      %v1447 = vld [vmem:[%s1439 + $0x38] sm:$0xff]
      %v1448 = vmul.f32 %v1435, %v1440
      %v1449 = vmul.f32 %v1431, %v1441
      %v1450 = vmul.f32 %v1436, %v1442
      %v1451 = vmul.f32 %v1432, %v1443
      %v1452 = vmul.f32 %v1437, %v1444
      %v1453 = vmul.f32 %v1433, %v1445
      %v1454 = vmul.f32 %v1438, %v1446
      %v1455 = vmul.f32 %v1434, %v1447
      %v1456 = vadd.f32 %v1407, %v1448
      %v1457 = vadd.f32 %v1408, %v1449
      %v1458 = vadd.f32 %v1409, %v1450
      %v1459 = vadd.f32 %v1410, %v1451
      %v1460 = vadd.f32 %v1411, %v1452
      %v1461 = vadd.f32 %v1412, %v1453
      %v1462 = vadd.f32 %v1413, %v1454
      %v1463 = vadd.f32 %v1414, %v1455
      %1464 = vrot.lane.b32.xlu0 %v1390, 16
      %v1465 = vpop.permute.xlu0 %1464
      %1466 = vrot.lane.b32.xlu0 %v1392, 16
      %v1467 = vpop.permute.xlu0 %1466
      %1468 = vrot.lane.b32.xlu0 %v1394, 16
      %v1469 = vpop.permute.xlu0 %1468
      %1470 = vrot.lane.b32.xlu0 %v1396, 16
      %v1471 = vpop.permute.xlu0 %1470
      %1472 = vrot.lane.b32.xlu0 %v1391, 16
      %v1473 = vpop.permute.xlu0 %1472
      %1474 = vrot.lane.b32.xlu0 %v1393, 16
      %v1475 = vpop.permute.xlu0 %1474
      %1476 = vrot.lane.b32.xlu0 %v1395, 16
      %v1477 = vpop.permute.xlu0 %1476
      %1478 = vrot.lane.b32.xlu0 %v1397, 16
      %v1479 = vpop.permute.xlu0 %1478
      %v1480 = vsel %vm767, %v1465, %v1473
      %v1481 = vsel %vm767, %v1467, %v1475
      %v1482 = vsel %vm767, %v1469, %v1477
      %v1483 = vsel %vm767, %v1471, %v1479
      %v1484 = vsel %vm767, %v1473, %v1465
      %v1485 = vsel %vm767, %v1475, %v1467
      %v1486 = vsel %vm767, %v1477, %v1469
      %v1487 = vsel %vm767, %v1479, %v1471
      %s1488 = scalar_lea.vmem %s3, 640
      %v1489 = vld [vmem:[%s1488] sm:$0xff]
      %v1490 = vld [vmem:[%s1488 + $0x8] sm:$0xff]
      %v1491 = vld [vmem:[%s1488 + $0x10] sm:$0xff]
      %v1492 = vld [vmem:[%s1488 + $0x18] sm:$0xff]
      %v1493 = vld [vmem:[%s1488 + $0x20] sm:$0xff]
      %v1494 = vld [vmem:[%s1488 + $0x28] sm:$0xff]
      %v1495 = vld [vmem:[%s1488 + $0x30] sm:$0xff]
      %v1496 = vld [vmem:[%s1488 + $0x38] sm:$0xff]
      %v1497 = vmul.f32 %v1484, %v1489
      %v1498 = vmul.f32 %v1480, %v1490
      %v1499 = vmul.f32 %v1485, %v1491
      %v1500 = vmul.f32 %v1481, %v1492
      %v1501 = vmul.f32 %v1486, %v1493
      %v1502 = vmul.f32 %v1482, %v1494
      %v1503 = vmul.f32 %v1487, %v1495
      %v1504 = vmul.f32 %v1483, %v1496
      %v1505 = vadd.f32 %v1456, %v1497
      %v1506 = vadd.f32 %v1457, %v1498
      %v1507 = vadd.f32 %v1458, %v1499
      %v1508 = vadd.f32 %v1459, %v1500
      %v1509 = vadd.f32 %v1460, %v1501
      %v1510 = vadd.f32 %v1461, %v1502
      %v1511 = vadd.f32 %v1462, %v1503
      %v1512 = vadd.f32 %v1463, %v1504
      %1513 = vrot.lane.b32.xlu0 %v1390, 15
      %v1514 = vpop.permute.xlu0 %1513
      %1515 = vrot.lane.b32.xlu0 %v1392, 15
      %v1516 = vpop.permute.xlu0 %1515
      %1517 = vrot.lane.b32.xlu0 %v1394, 15
      %v1518 = vpop.permute.xlu0 %1517
      %1519 = vrot.lane.b32.xlu0 %v1396, 15
      %v1520 = vpop.permute.xlu0 %1519
      %1521 = vrot.lane.b32.xlu0 %v1391, 15
      %v1522 = vpop.permute.xlu0 %1521
      %1523 = vrot.lane.b32.xlu0 %v1393, 15
      %v1524 = vpop.permute.xlu0 %1523
      %1525 = vrot.lane.b32.xlu0 %v1395, 15
      %v1526 = vpop.permute.xlu0 %1525
      %1527 = vrot.lane.b32.xlu0 %v1397, 15
      %v1528 = vpop.permute.xlu0 %1527
      %v1529 = vsel %vm817, %v1514, %v1522
      %v1530 = vsel %vm817, %v1516, %v1524
      %v1531 = vsel %vm817, %v1518, %v1526
      %v1532 = vsel %vm817, %v1520, %v1528
      %v1533 = vsel %vm817, %v1522, %v1514
      %v1534 = vsel %vm817, %v1524, %v1516
      %v1535 = vsel %vm817, %v1526, %v1518
      %v1536 = vsel %vm817, %v1528, %v1520
      %s1537 = scalar_lea.vmem %s3, 704
      %v1538 = vld [vmem:[%s1537] sm:$0xff]
      %v1539 = vld [vmem:[%s1537 + $0x8] sm:$0xff]
      %v1540 = vld [vmem:[%s1537 + $0x10] sm:$0xff]
      %v1541 = vld [vmem:[%s1537 + $0x18] sm:$0xff]
      %v1542 = vld [vmem:[%s1537 + $0x20] sm:$0xff]
      %v1543 = vld [vmem:[%s1537 + $0x28] sm:$0xff]
      %v1544 = vld [vmem:[%s1537 + $0x30] sm:$0xff]
      %v1545 = vld [vmem:[%s1537 + $0x38] sm:$0xff]
      %v1546 = vmul.f32 %v1533, %v1538
      %v1547 = vmul.f32 %v1529, %v1539
      %v1548 = vmul.f32 %v1534, %v1540
      %v1549 = vmul.f32 %v1530, %v1541
      %v1550 = vmul.f32 %v1535, %v1542
      %v1551 = vmul.f32 %v1531, %v1543
      %v1552 = vmul.f32 %v1536, %v1544
      %v1553 = vmul.f32 %v1532, %v1545
      %v1554 = vadd.f32 %v1505, %v1546
      %v1555 = vadd.f32 %v1506, %v1547
      %v1556 = vadd.f32 %v1507, %v1548
      %v1557 = vadd.f32 %v1508, %v1549
      %v1558 = vadd.f32 %v1509, %v1550
      %v1559 = vadd.f32 %v1510, %v1551
      %v1560 = vadd.f32 %v1511, %v1552
      %v1561 = vadd.f32 %v1512, %v1553
      %1562 = vrot.lane.b32.xlu0 %v1390, 1
      %v1563 = vpop.permute.xlu0 %1562
      %1564 = vrot.lane.b32.xlu0 %v1392, 1
      %v1565 = vpop.permute.xlu0 %1564
      %1566 = vrot.lane.b32.xlu0 %v1394, 1
      %v1567 = vpop.permute.xlu0 %1566
      %1568 = vrot.lane.b32.xlu0 %v1396, 1
      %v1569 = vpop.permute.xlu0 %1568
      %1570 = vrot.lane.b32.xlu0 %v1391, 1
      %v1571 = vpop.permute.xlu0 %1570
      %1572 = vrot.lane.b32.xlu0 %v1393, 1
      %v1573 = vpop.permute.xlu0 %1572
      %1574 = vrot.lane.b32.xlu0 %v1395, 1
      %v1575 = vpop.permute.xlu0 %1574
      %1576 = vrot.lane.b32.xlu0 %v1397, 1
      %v1577 = vpop.permute.xlu0 %1576
      %v1578 = vsel %vm867, %v1563, %v1571
      %v1579 = vsel %vm867, %v1565, %v1573
      %v1580 = vsel %vm867, %v1567, %v1575
      %v1581 = vsel %vm867, %v1569, %v1577
      %v1582 = vsel %vm867, %v1571, %v1563
      %v1583 = vsel %vm867, %v1573, %v1565
      %v1584 = vsel %vm867, %v1575, %v1567
      %v1585 = vsel %vm867, %v1577, %v1569
      %s1586 = scalar_lea.vmem %s3, 768
      %v1587 = vld [vmem:[%s1586] sm:$0xff]
      %v1588 = vld [vmem:[%s1586 + $0x8] sm:$0xff]
      %v1589 = vld [vmem:[%s1586 + $0x10] sm:$0xff]
      %v1590 = vld [vmem:[%s1586 + $0x18] sm:$0xff]
      %v1591 = vld [vmem:[%s1586 + $0x20] sm:$0xff]
      %v1592 = vld [vmem:[%s1586 + $0x28] sm:$0xff]
      %v1593 = vld [vmem:[%s1586 + $0x30] sm:$0xff]
      %v1594 = vld [vmem:[%s1586 + $0x38] sm:$0xff]
      %v1595 = vmul.f32 %v1582, %v1587
      %v1596 = vmul.f32 %v1578, %v1588
      %v1597 = vmul.f32 %v1583, %v1589
      %v1598 = vmul.f32 %v1579, %v1590
      %v1599 = vmul.f32 %v1584, %v1591
      %v1600 = vmul.f32 %v1580, %v1592
      %v1601 = vmul.f32 %v1585, %v1593
      %v1602 = vmul.f32 %v1581, %v1594
      %v1603 = vadd.f32 %v1554, %v1595
      %v1604 = vadd.f32 %v1555, %v1596
      %v1605 = vadd.f32 %v1556, %v1597
      %v1606 = vadd.f32 %v1557, %v1598
      %v1607 = vadd.f32 %v1558, %v1599
      %v1608 = vadd.f32 %v1559, %v1600
      %v1609 = vadd.f32 %v1560, %v1601
      %v1610 = vadd.f32 %v1561, %v1602
      %1611 = vrot.lane.b32.xlu0 %v1390, 127
      %v1612 = vpop.permute.xlu0 %1611
      %1613 = vrot.lane.b32.xlu0 %v1392, 127
      %v1614 = vpop.permute.xlu0 %1613
      %1615 = vrot.lane.b32.xlu0 %v1394, 127
      %v1616 = vpop.permute.xlu0 %1615
      %1617 = vrot.lane.b32.xlu0 %v1396, 127
      %v1618 = vpop.permute.xlu0 %1617
      %1619 = vrot.lane.b32.xlu0 %v1391, 127
      %v1620 = vpop.permute.xlu0 %1619
      %1621 = vrot.lane.b32.xlu0 %v1393, 127
      %v1622 = vpop.permute.xlu0 %1621
      %1623 = vrot.lane.b32.xlu0 %v1395, 127
      %v1624 = vpop.permute.xlu0 %1623
      %1625 = vrot.lane.b32.xlu0 %v1397, 127
      %v1626 = vpop.permute.xlu0 %1625
      %v1627 = vsel %vm917, %v1612, %v1620
      %v1628 = vsel %vm917, %v1614, %v1622
      %v1629 = vsel %vm917, %v1616, %v1624
      %v1630 = vsel %vm917, %v1618, %v1626
      %v1631 = vsel %vm917, %v1620, %v1612
      %v1632 = vsel %vm917, %v1622, %v1614
      %v1633 = vsel %vm917, %v1624, %v1616
      %v1634 = vsel %vm917, %v1626, %v1618
      %s1635 = scalar_lea.vmem %s3, 896
      %v1636 = vld [vmem:[%s1635] sm:$0xff]
      %v1637 = vld [vmem:[%s1635 + $0x8] sm:$0xff]
      %v1638 = vld [vmem:[%s1635 + $0x10] sm:$0xff]
      %v1639 = vld [vmem:[%s1635 + $0x18] sm:$0xff]
      %v1640 = vld [vmem:[%s1635 + $0x20] sm:$0xff]
      %v1641 = vld [vmem:[%s1635 + $0x28] sm:$0xff]
      %v1642 = vld [vmem:[%s1635 + $0x30] sm:$0xff]
      %v1643 = vld [vmem:[%s1635 + $0x38] sm:$0xff]
      %v1644 = vmul.f32 %v1627, %v1636
      %v1645 = vmul.f32 %v1631, %v1637
      %v1646 = vmul.f32 %v1628, %v1638
      %v1647 = vmul.f32 %v1632, %v1639
      %v1648 = vmul.f32 %v1629, %v1640
      %v1649 = vmul.f32 %v1633, %v1641
      %v1650 = vmul.f32 %v1630, %v1642
      %v1651 = vmul.f32 %v1634, %v1643
      %v1652 = vadd.f32 %v1603, %v1644
      %v1653 = vadd.f32 %v1604, %v1645
      %v1654 = vadd.f32 %v1605, %v1646
      %v1655 = vadd.f32 %v1606, %v1647
      %v1656 = vadd.f32 %v1607, %v1648
      %v1657 = vadd.f32 %v1608, %v1649
      %v1658 = vadd.f32 %v1609, %v1650
      %v1659 = vadd.f32 %v1610, %v1651
      %1660 = vrot.lane.b32.xlu0 %v1390, 113
      %v1661 = vpop.permute.xlu0 %1660
      %1662 = vrot.lane.b32.xlu0 %v1392, 113
      %v1663 = vpop.permute.xlu0 %1662
      %1664 = vrot.lane.b32.xlu0 %v1394, 113
      %v1665 = vpop.permute.xlu0 %1664
      %1666 = vrot.lane.b32.xlu0 %v1396, 113
      %v1667 = vpop.permute.xlu0 %1666
      %1668 = vrot.lane.b32.xlu0 %v1391, 113
      %v1669 = vpop.permute.xlu0 %1668
      %1670 = vrot.lane.b32.xlu0 %v1393, 113
      %v1671 = vpop.permute.xlu0 %1670
      %1672 = vrot.lane.b32.xlu0 %v1395, 113
      %v1673 = vpop.permute.xlu0 %1672
      %1674 = vrot.lane.b32.xlu0 %v1397, 113
      %v1675 = vpop.permute.xlu0 %1674
      %v1676 = vsel %vm967, %v1661, %v1669
      %v1677 = vsel %vm967, %v1663, %v1671
      %v1678 = vsel %vm967, %v1665, %v1673
      %v1679 = vsel %vm967, %v1667, %v1675
      %v1680 = vsel %vm967, %v1669, %v1661
      %v1681 = vsel %vm967, %v1671, %v1663
      %v1682 = vsel %vm967, %v1673, %v1665
      %v1683 = vsel %vm967, %v1675, %v1667
      %s1684 = scalar_lea.vmem %s3, 960
      %v1685 = vld [vmem:[%s1684] sm:$0xff]
      %v1686 = vld [vmem:[%s1684 + $0x8] sm:$0xff]
      %v1687 = vld [vmem:[%s1684 + $0x10] sm:$0xff]
      %v1688 = vld [vmem:[%s1684 + $0x18] sm:$0xff]
      %v1689 = vld [vmem:[%s1684 + $0x20] sm:$0xff]
      %v1690 = vld [vmem:[%s1684 + $0x28] sm:$0xff]
      %v1691 = vld [vmem:[%s1684 + $0x30] sm:$0xff]
      %v1692 = vld [vmem:[%s1684 + $0x38] sm:$0xff]
      %v1693 = vmul.f32 %v1676, %v1685
      %v1694 = vmul.f32 %v1680, %v1686
      %v1695 = vmul.f32 %v1677, %v1687
      %v1696 = vmul.f32 %v1681, %v1688
      %v1697 = vmul.f32 %v1678, %v1689
      %v1698 = vmul.f32 %v1682, %v1690
      %v1699 = vmul.f32 %v1679, %v1691
      %v1700 = vmul.f32 %v1683, %v1692
      %v1701 = vadd.f32 %v1652, %v1693
      %v1702 = vadd.f32 %v1653, %v1694
      %v1703 = vadd.f32 %v1654, %v1695
      %v1704 = vadd.f32 %v1655, %v1696
      %v1705 = vadd.f32 %v1656, %v1697
      %v1706 = vadd.f32 %v1657, %v1698
      %v1707 = vadd.f32 %v1658, %v1699
      %v1708 = vadd.f32 %v1659, %v1700
      %1709 = vrot.lane.b32.xlu0 %v1390, 112
      %v1710 = vpop.permute.xlu0 %1709
      %1711 = vrot.lane.b32.xlu0 %v1392, 112
      %v1712 = vpop.permute.xlu0 %1711
      %1713 = vrot.lane.b32.xlu0 %v1394, 112
      %v1714 = vpop.permute.xlu0 %1713
      %1715 = vrot.lane.b32.xlu0 %v1396, 112
      %v1716 = vpop.permute.xlu0 %1715
      %1717 = vrot.lane.b32.xlu0 %v1391, 112
      %v1718 = vpop.permute.xlu0 %1717
      %1719 = vrot.lane.b32.xlu0 %v1393, 112
      %v1720 = vpop.permute.xlu0 %1719
      %1721 = vrot.lane.b32.xlu0 %v1395, 112
      %v1722 = vpop.permute.xlu0 %1721
      %1723 = vrot.lane.b32.xlu0 %v1397, 112
      %v1724 = vpop.permute.xlu0 %1723
      %v1725 = vsel %vm1017, %v1710, %v1718
      %v1726 = vsel %vm1017, %v1712, %v1720
      %v1727 = vsel %vm1017, %v1714, %v1722
      %v1728 = vsel %vm1017, %v1716, %v1724
      %v1729 = vsel %vm1017, %v1718, %v1710
      %v1730 = vsel %vm1017, %v1720, %v1712
      %v1731 = vsel %vm1017, %v1722, %v1714
      %v1732 = vsel %vm1017, %v1724, %v1716
      %s1733 = scalar_lea.vmem %s3, 1024
      %v1734 = vld [vmem:[%s1733] sm:$0xff]
      %v1735 = vld [vmem:[%s1733 + $0x8] sm:$0xff]
      %v1736 = vld [vmem:[%s1733 + $0x10] sm:$0xff]
      %v1737 = vld [vmem:[%s1733 + $0x18] sm:$0xff]
      %v1738 = vld [vmem:[%s1733 + $0x20] sm:$0xff]
      %v1739 = vld [vmem:[%s1733 + $0x28] sm:$0xff]
      %v1740 = vld [vmem:[%s1733 + $0x30] sm:$0xff]
      %v1741 = vld [vmem:[%s1733 + $0x38] sm:$0xff]
      %v1742 = vmul.f32 %v1725, %v1734
      %v1743 = vmul.f32 %v1729, %v1735
      %v1744 = vmul.f32 %v1726, %v1736
      %v1745 = vmul.f32 %v1730, %v1737
      %v1746 = vmul.f32 %v1727, %v1738
      %v1747 = vmul.f32 %v1731, %v1739
      %v1748 = vmul.f32 %v1728, %v1740
      %v1749 = vmul.f32 %v1732, %v1741
      %v1750 = vadd.f32 %v1701, %v1742
      %v1751 = vadd.f32 %v1702, %v1743
      %v1752 = vadd.f32 %v1703, %v1744
      %v1753 = vadd.f32 %v1704, %v1745
      %v1754 = vadd.f32 %v1705, %v1746
      %v1755 = vadd.f32 %v1706, %v1747
      %v1756 = vadd.f32 %v1707, %v1748
      %v1757 = vadd.f32 %v1708, %v1749
      %1758 = vrot.lane.b32.xlu0 %v1390, 111
      %v1759 = vpop.permute.xlu0 %1758
      %1760 = vrot.lane.b32.xlu0 %v1392, 111
      %v1761 = vpop.permute.xlu0 %1760
      %1762 = vrot.lane.b32.xlu0 %v1394, 111
      %v1763 = vpop.permute.xlu0 %1762
      %1764 = vrot.lane.b32.xlu0 %v1396, 111
      %v1765 = vpop.permute.xlu0 %1764
      %1766 = vrot.lane.b32.xlu0 %v1391, 111
      %v1767 = vpop.permute.xlu0 %1766
      %1768 = vrot.lane.b32.xlu0 %v1393, 111
      %v1769 = vpop.permute.xlu0 %1768
      %1770 = vrot.lane.b32.xlu0 %v1395, 111
      %v1771 = vpop.permute.xlu0 %1770
      %1772 = vrot.lane.b32.xlu0 %v1397, 111
      %v1773 = vpop.permute.xlu0 %1772
      %v1774 = vsel %vm1067, %v1759, %v1767
      %v1775 = vsel %vm1067, %v1761, %v1769
      %v1776 = vsel %vm1067, %v1763, %v1771
      %v1777 = vsel %vm1067, %v1765, %v1773
      %v1778 = vsel %vm1067, %v1767, %v1759
      %v1779 = vsel %vm1067, %v1769, %v1761
      %v1780 = vsel %vm1067, %v1771, %v1763
      %v1781 = vsel %vm1067, %v1773, %v1765
      %s1782 = scalar_lea.vmem %s3, 1088
      %v1783 = vld [vmem:[%s1782] sm:$0xff]
      %v1784 = vld [vmem:[%s1782 + $0x8] sm:$0xff]
      %v1785 = vld [vmem:[%s1782 + $0x10] sm:$0xff]
      %v1786 = vld [vmem:[%s1782 + $0x18] sm:$0xff]
      %v1787 = vld [vmem:[%s1782 + $0x20] sm:$0xff]
      %v1788 = vld [vmem:[%s1782 + $0x28] sm:$0xff]
      %v1789 = vld [vmem:[%s1782 + $0x30] sm:$0xff]
      %v1790 = vld [vmem:[%s1782 + $0x38] sm:$0xff]
      %v1791 = vmul.f32 %v1774, %v1783
      %v1792 = vmul.f32 %v1778, %v1784
      %v1793 = vmul.f32 %v1775, %v1785
      %v1794 = vmul.f32 %v1779, %v1786
      %v1795 = vmul.f32 %v1776, %v1787
      %v1796 = vmul.f32 %v1780, %v1788
      %v1797 = vmul.f32 %v1777, %v1789
      %v1798 = vmul.f32 %v1781, %v1790
      %v1799 = vadd.f32 %v1750, %v1791
      %v1800 = vadd.f32 %v1751, %v1792
      %v1801 = vadd.f32 %v1752, %v1793
      %v1802 = vadd.f32 %v1753, %v1794
      %v1803 = vadd.f32 %v1754, %v1795
      %v1804 = vadd.f32 %v1755, %v1796
      %v1805 = vadd.f32 %v1756, %v1797
      %v1806 = vadd.f32 %v1757, %v1798
      %1808 = vset.pattern.permute.xlu0 0
      %1809 = vperm.xlu0 %1808, %v1313
      %v1810 = vpop.permute.xlu0 %1809
      %v1813 = vsel %vm1111, %v1312, 0
      %1815 = vmatprep.subr.mxu0 %v1800
      %1816 = vmatpush1.msra.mxu0 %v1799
      %1817 = vmatprep.subr.mxu0 %v1802
      %1818 = vmatpush1.msra.mxu0 %v1801
      %1819 = vmatprep.subr.mxu0 %v1804
      %1820 = vmatpush1.msra.mxu0 %v1803
      %1821 = vmatprep.subr.mxu0 %v1806
      %1822 = vmatpush1.msra.mxu0 %v1805
      %1823 = vmatprep.subr.mxu0 0.0
      %1824 = vmatpush1.msra.mxu0 0.0
      %1825 = vmatprep.subr.mxu0 0.0
      %1826 = vmatpush1.msra.mxu0 0.0
      %1827 = vmatprep.subr.mxu0 0.0
      %1828 = vmatpush1.msra.mxu0 0.0
      %1829 = vmatprep.subr.mxu0 0.0
      %1830 = vmatpush1.msra.mxu0 0.0
      %1831 = vmatprep.subr.mxu0 0.0
      %1832 = vmatpush1.msra.mxu0 0.0
      %1833 = vmatprep.subr.mxu0 0.0
      %1834 = vmatpush1.msra.mxu0 0.0
      %1835 = vmatprep.subr.mxu0 0.0
      %1836 = vmatpush1.msra.mxu0 0.0
      %1837 = vmatprep.subr.mxu0 0.0
      %1838 = vmatpush1.msra.mxu0 0.0
      %1839 = vmatprep.subr.mxu0 0.0
      %1840 = vmatpush1.msra.mxu0 0.0
      %1841 = vmatprep.subr.mxu0 0.0
      %1842 = vmatpush1.msra.mxu0 0.0
      %1843 = vmatprep.subr.mxu0 0.0
      %1844 = vmatpush1.msra.mxu0 0.0
      %1845 = vmatprep.subr.mxu0 0.0
      %1846 = vmatpush1.msra.mxu0 0.0
      %1847 = vmatprep.subr.mxu0 0.0
      %1848 = vmatpush1.msra.mxu0 0.0
      %1849 = vmatprep.subr.mxu0 0.0
      %1850 = vmatpush1.msra.mxu0 0.0
      %1851 = vmatprep.subr.mxu0 0.0
      %1852 = vmatpush1.msra.mxu0 0.0
      %1853 = vmatprep.subr.mxu0 0.0
      %1854 = vmatpush1.msra.mxu0 0.0
      %1855 = vmatprep.subr.mxu0 0.0
      %1856 = vmatpush1.msra.mxu0 0.0
      %1857 = vmatprep.subr.mxu0 0.0
      %1858 = vmatpush1.msra.mxu0 0.0
      %1859 = vmatprep.subr.mxu0 0.0
      %1860 = vmatpush1.msra.mxu0 0.0
      %1861 = vmatprep.subr.mxu0 0.0
      %1862 = vmatpush1.msra.mxu0 0.0
      %1863 = vmatprep.subr.mxu0 0.0
      %1864 = vmatpush1.msra.mxu0 0.0
      %1865 = vmatprep.subr.mxu0 0.0
      %1866 = vmatpush1.msra.mxu0 0.0
      %1867 = vmatprep.subr.mxu0 0.0
      %1868 = vmatpush1.msra.mxu0 0.0
      %1869 = vmatprep.subr.mxu0 0.0
      %1870 = vmatpush1.msra.mxu0 0.0
      %1871 = vmatprep.subr.mxu0 0.0
      %1872 = vmatpush1.msra.mxu0 0.0
      %1873 = vmatprep.subr.mxu0 0.0
      %1874 = vmatpush1.msra.mxu0 0.0
      %1875 = vmatprep.subr.mxu0 0.0
      %1876 = vmatpush1.msra.mxu0 0.0
      %1877 = vmatprep.subr.mxu0 0.0
      %1878 = vmatpush1.msra.mxu0 0.0
      %1879 = vmatprep.mubr.f32.mxu0 0.0
      %1880 = vmatmul.mubr.f32.gmra.mrb[0].mxu0 %v1813
      %v1881 = vpop.f32.mrb[0].mxu0
      %v1882 = vadd.f32 %v1810, %v1881
      %v1883 = vpop.f32.mrb[0].mxu0
      %v1884 = vadd.f32 %v1810, %v1883
      %1885 = vdwg.mxu0
      %v1886 = vadd.f32 %v1882, %v1195
      %v1887 = vadd.f32 %v1884, %v1196
      %1888 = vst [vmem:[%s241] sm:$0xff] %v1886
      %1889 = vst [vmem:[%s241 + $0x8] sm:$0xff] %v1887
      %p1890 = scmp.lt.s32.totalorder %s16, 1
      %s1891 = scalar_select %p1890, %s16, 1
      %s1892 = smul.addr %s1891, 2
      %s1893 = smul.addr %s1892, 8
      %s1894 = scalar_lea.vmem %s5, %s1893
      // Predicated region
      $region41: #{dw_inverted_up_stage.1} parent=39 // pred_check
        %p1895 = pneg %p149
      $region42: #{dw_inverted_up_stage.1} parent=39 // pred_check_branch
        %1897 = sbr.rel (%p1895) target = $region44
      $region43: #{dw_inverted_up_stage.1} parent=39 // pred_region
        _
      $region44: #{dw_inverted_up_stage.1} parent=39 // pred_fallthru
        _
    $region40: #{dw_inverted_up_stage.1} parent=5 // pred_fallthru
      _
    %p1898 = scmp.le.s32.totalorder 2, %s11
    // Predicated region
    $region45: #{dw_inverted_up_stage.1} parent=5 // pred_check
      %p1899 = pneg %p1898
    $region46: #{dw_inverted_up_stage.1} parent=5 // pred_check_branch
      %1901 = sbr.rel (%p1899) target = $region48
    $region47: #{dw_inverted_up_stage.1} parent=5 // pred_region
      %s1902 = ssub.s32 %s11, 2
      // Predicated region
      $region49: #{dw_inverted_up_stage.1} parent=47 // pred_check
        %p1903 = pneg %p155
      $region50: #{dw_inverted_up_stage.1} parent=47 // pred_check_branch
        %1905 = sbr.rel (%p1903) target = $region52
      $region51: #{dw_inverted_up_stage.1} parent=47 // pred_region
        %p1906 = scmp.lt.s32.totalorder %s17, 1
        %s1907 = scalar_select %p1906, %s17, 1
        %s1908 = smul.addr %s1907, 2
        %s1909 = smul.addr %s1908, 8
        %s1910 = scalar_lea.vmem %s5, %s1909
      $region52: #{dw_inverted_up_stage.1} parent=47 // pred_fallthru
        _
    $region48: #{dw_inverted_up_stage.1} parent=5 // pred_fallthru
      _
  $region6: #{dw_inverted_up_stage.1} parent=0 // loop_footer
    %s15 = sadd.s32 1, %s11
  $region7: #{dw_inverted_up_stage.1} parent=0 // loop_footer_branch
    %10 = sbr.rel target = $region3
  $region8: #{dw_inverted_up_stage.1} parent=0 // loop_exit
    _

</llo_original>
